<compile_context>
chip_gen: v7x
topology: tpu7x:2x2x1
jax: 0.10.0
libtpu: 0.0.40
codegen_flags: <defaults>
</compile_context>

<pallas_src>
import functools

import jax
import jax.numpy as jnp
from jax.experimental import pallas as pl
from jax.experimental.pallas import tpu as pltpu

LN_EPS = 1e-5


def _layernorm(x, gamma, beta):
    mu = jnp.mean(x, axis=-1, keepdims=True)
    var = jnp.mean((x - mu) ** 2, axis=-1, keepdims=True)
    return (x - mu) * jax.lax.rsqrt(var + LN_EPS) * gamma + beta


def _gelu_exact(x):
    # exact (erf-based) GELU, matching torch.nn.GELU default
    return 0.5 * x * (1.0 + jax.lax.erf(x * (2.0 ** -0.5)))


def transformer_kernel(x_ref,
                       ag_ref, ab_ref, wqkv_ref, wo_ref, bo_ref,
                       fg_ref, fb_ref, w1_ref, b1_ref, w2_ref, b2_ref,
                       o_ref,
                       acc_ref, ctx_ref,
                       *, shard_b, seq, heads, dim_head):
    layer = pl.program_id(1)
    depth = pl.num_programs(1)
    inner = heads * dim_head
    m = shard_b * seq

    # Initialize the resident f32 residual stream from the input on layer 0.
    @pl.when(layer == 0)
    def _():
        acc_ref[...] = x_ref[...].astype(jnp.float32)

    x = acc_ref[...]                                     # (m, dim) f32 residual stream

    # ---------------- PreNorm + Attention + residual ----------------
    xn = _layernorm(x, ag_ref[0], ab_ref[0])
    xn_bf = xn.astype(jnp.bfloat16)

    # Fused QKV projection: one lane-dense (m, dim) x (dim, 3*inner) matmul.
    # The 1/sqrt(dim_head) softmax scale is folded into Wq at pack time.
    qkv = jnp.dot(xn_bf, wqkv_ref[0], preferred_element_type=jnp.float32)
    qkv = qkv.astype(jnp.bfloat16)                       # (m, 3*inner), cols = [q | k | v], (h d)

    # Per-head softmax attention (scores/context only — projections stay fused).
    for h in range(heads):
        lo = h * dim_head
        qh = qkv[:, lo:lo + dim_head].reshape(shard_b, seq, dim_head)
        kh = qkv[:, inner + lo:inner + lo + dim_head].reshape(shard_b, seq, dim_head)
        vh = qkv[:, 2 * inner + lo:2 * inner + lo + dim_head].reshape(shard_b, seq, dim_head)

        s = jnp.einsum('bid,bjd->bij', qh, kh,
                       preferred_element_type=jnp.float32)          # (shard_b, seq, seq)
        s = s - jnp.max(s, axis=-1, keepdims=True)
        e = jnp.exp(s)
        p = e * pl.reciprocal(jnp.sum(e, axis=-1, keepdims=True), approx=True)
        ch = jnp.einsum('bij,bjd->bid', p.astype(jnp.bfloat16), vh,
                        preferred_element_type=jnp.float32)          # (shard_b, seq, dh)
        ctx_ref[:, lo:lo + dim_head] = ch.reshape(m, dim_head).astype(jnp.bfloat16)

    # Fused output projection: one (m, inner) x (inner, dim) matmul.
    attn_out = jnp.dot(ctx_ref[...], wo_ref[0], preferred_element_type=jnp.float32)
    attn_out = attn_out + bo_ref[0]
    x = x + attn_out

    # ---------------- PreNorm + FeedForward + residual ----------------
    xn2 = _layernorm(x, fg_ref[0], fb_ref[0]).astype(jnp.bfloat16)
    hid = jnp.dot(xn2, w1_ref[0], preferred_element_type=jnp.float32) + b1_ref[0]
    hid = _gelu_exact(hid).astype(jnp.bfloat16)
    y = jnp.dot(hid, w2_ref[0], preferred_element_type=jnp.float32) + b2_ref[0]

    acc_ref[...] = x + y

    # Write the HBM output only once per batch shard, after the last layer.
    @pl.when(layer == depth - 1)
    def _():
        o_ref[...] = acc_ref[...].astype(o_ref.dtype)


def _stacked_spec(arr):
    # all stacked params are 3-D: (depth, a, b); stream one layer at a time
    return pl.BlockSpec((1,) + arr.shape[1:], lambda b, l: (l, 0, 0))


def _tpu_config(B, N):
    """Generation-aware (num_batch_shards, vmem_limit_bytes) defaults."""
    try:
        kind = jax.devices()[0].device_kind.lower()
    except Exception:
        kind = ""
    if "v7" in kind or "7x" in kind:
        # 2 TensorCores: shard batch only when each shard still fills the MXU.
        shards = 2 if (B % 2 == 0 and (B // 2) * N >= 512) else 1
        return shards, 48 * 1024 * 1024
    if "v6" in kind or "v5e" in kind or "v5 lite" in kind or "v5litepod" in kind:
        # single TensorCore, 128 MiB physical VMEM: 1 shard, bigger scoped limit.
        return 1, 100 * 1024 * 1024
    return 1, None


def transformer_forward(x, packed, *, heads, dim_head,
                        num_batch_shards=None, vmem_limit_bytes=None):
    B, N, dim = x.shape
    depth = packed["wqkv"].shape[0]
    mlp_dim = packed["w1"].shape[-1]
    inner = heads * dim_head

    auto_shards, auto_vmem = _tpu_config(B, N)
    shards = auto_shards if num_batch_shards is None else num_batch_shards
    if vmem_limit_bytes is None:
        vmem_limit_bytes = auto_vmem
    assert B % shards == 0
    shard_b = B // shards
    m = shard_b * N

    x2 = x.reshape(B * N, dim)

    kernel = functools.partial(transformer_kernel, shard_b=shard_b, seq=N,
                               heads=heads, dim_head=dim_head)

    # advisory cost estimate for the XLA scheduler
    m_total = B * N
    flops_per_layer = (2 * m_total * dim * 3 * inner          # fused qkv projection
                       + 4 * B * heads * N * N * dim_head     # scores + context
                       + 2 * m_total * inner * dim            # output projection
                       + 4 * m_total * dim * mlp_dim)         # feed-forward
    flops = depth * flops_per_layer
    transcendentals = depth * (B * heads * N * N + m_total * mlp_dim + 2 * m_total)
    weight_bytes = sum(int(v.size) * v.dtype.itemsize for v in packed.values())
    bytes_accessed = 2 * int(x.size) * x.dtype.itemsize + shards * weight_bytes

    compiler_kwargs = dict(dimension_semantics=("parallel", "arbitrary"))
    if vmem_limit_bytes is not None:
        compiler_kwargs["vmem_limit_bytes"] = int(vmem_limit_bytes)

    out2 = pl.pallas_call(
        kernel,
        out_shape=jax.ShapeDtypeStruct((B * N, dim), x.dtype),
        grid_spec=pltpu.PrefetchScalarGridSpec(
            num_scalar_prefetch=0,
            grid=(shards, depth),
            in_specs=[
                pl.BlockSpec((m, dim), lambda b, l: (b, 0)),     # activations
                _stacked_spec(packed["attn_ln_g"]),
                _stacked_spec(packed["attn_ln_b"]),
                _stacked_spec(packed["wqkv"]),
                _stacked_spec(packed["wo"]),
                _stacked_spec(packed["b_out"]),
                _stacked_spec(packed["ffn_ln_g"]),
                _stacked_spec(packed["ffn_ln_b"]),
                _stacked_spec(packed["w1"]),
                _stacked_spec(packed["b1"]),
                _stacked_spec(packed["w2"]),
                _stacked_spec(packed["b2"]),
            ],
            out_specs=pl.BlockSpec((m, dim), lambda b, l: (b, 0)),
            scratch_shapes=[
                pltpu.VMEM((m, dim), jnp.float32),       # f32 resident residual stream
                pltpu.VMEM((m, inner), jnp.bfloat16),    # assembled attention context
            ],
        ),
        compiler_params=pltpu.CompilerParams(**compiler_kwargs),
        cost_estimate=pl.CostEstimate(flops=int(flops),
                                      transcendentals=int(transcendentals),
                                      bytes_accessed=int(bytes_accessed)),
    )(x2,
      packed["attn_ln_g"], packed["attn_ln_b"],
      packed["wqkv"], packed["wo"], packed["b_out"],
      packed["ffn_ln_g"], packed["ffn_ln_b"],
      packed["w1"], packed["b1"], packed["w2"], packed["b2"])
    return out2.reshape(B, N, dim)


# ---------------- parameter construction (mirrors the PyTorch module) ----------------

def init_params(key, *, dim, depth, heads, dim_head, mlp_dim):
    inner = heads * dim_head
    layers = []
    for _ in range(depth):
        key, k1, k2, k3, k4 = jax.random.split(key, 5)
        attn_p = {
            "ln_g": jnp.ones((1, dim), jnp.float32),
            "ln_b": jnp.zeros((1, dim), jnp.float32),
            "w_qkv": jax.random.normal(k1, (dim, 3 * inner), jnp.float32) * (dim ** -0.5),
            "w_out": jax.random.normal(k2, (inner, dim), jnp.float32) * (inner ** -0.5),
            "b_out": jnp.zeros((1, dim), jnp.float32),
        }
        ffn_p = {
            "ln_g": jnp.ones((1, dim), jnp.float32),
            "ln_b": jnp.zeros((1, dim), jnp.float32),
            "w1": jax.random.normal(k3, (dim, mlp_dim), jnp.float32) * (dim ** -0.5),
            "b1": jnp.zeros((1, mlp_dim), jnp.float32),
            "w2": jax.random.normal(k4, (mlp_dim, dim), jnp.float32) * (mlp_dim ** -0.5),
            "b2": jnp.zeros((1, dim), jnp.float32),
        }
        layers.append((attn_p, ffn_p))
    return layers


def pack_params(layers, *, heads, dim_head, weight_dtype=jnp.bfloat16):
    """Stack per-layer params along a leading depth dim.  Matmul weights are
    bf16 and lane-dense (qkv fused as (dim, 3*inner), wo as (inner, dim)); the
    softmax scale is folded into Wq; LN params + biases stay f32."""
    depth = len(layers)
    inner = heads * dim_head
    scale = dim_head ** (-0.5)

    def stack(idx, name, dtype):
        return jnp.stack([layers[l][idx][name] for l in range(depth)]).astype(dtype)

    wqkv_l = []
    for attn_p, _ in layers:
        w = attn_p["w_qkv"]                              # (dim, 3*inner), cols = [q | k | v]
        w = w.at[:, :inner].multiply(scale)              # fold softmax scale into Wq
        wqkv_l.append(w)

    return {
        "attn_ln_g": stack(0, "ln_g", jnp.float32),
        "attn_ln_b": stack(0, "ln_b", jnp.float32),
        "wqkv": jnp.stack(wqkv_l).astype(weight_dtype),
        "wo": stack(0, "w_out", weight_dtype),
        "b_out": stack(0, "b_out", jnp.float32),
        "ffn_ln_g": stack(1, "ln_g", jnp.float32),
        "ffn_ln_b": stack(1, "ln_b", jnp.float32),
        "w1": stack(1, "w1", weight_dtype),
        "b1": stack(1, "b1", jnp.float32),
        "w2": stack(1, "w2", weight_dtype),
        "b2": stack(1, "b2", jnp.float32),
    }


# ---------------- pure-JAX (f32) reference for a sanity check ----------------

def ref_forward(x, layers, *, heads, dim_head):
    dh = dim_head
    for attn_p, ffn_p in layers:
        b, n, dim = x.shape
        inner = heads * dh
        xn = _layernorm(x, attn_p["ln_g"], attn_p["ln_b"])
        qkv = xn @ attn_p["w_qkv"]
        q, k, v = jnp.split(qkv, 3, axis=-1)
        q, k, v = (t.reshape(b, n, heads, dh).transpose(0, 2, 1, 3) for t in (q, k, v))
        dots = jnp.einsum('bhid,bhjd->bhij', q, k) * dh ** -0.5
        attn = jax.nn.softmax(dots, axis=-1)
        out = jnp.einsum('bhij,bhjd->bhid', attn, v)
        out = out.transpose(0, 2, 1, 3).reshape(b, n, inner)
        x = x + (out @ attn_p["w_out"] + attn_p["b_out"])
        xn = _layernorm(x, ffn_p["ln_g"], ffn_p["ln_b"])
        h = xn @ ffn_p["w1"] + ffn_p["b1"]
        h = _gelu_exact(h)
        x = x + (h @ ffn_p["w2"] + ffn_p["b2"])
    return x


if __name__ == "__main__":
    # small config: dim=32, depth=2, heads=4, dim_head=8, mlp_dim=64
    B, N, DIM = 2, 8, 32
    DEPTH, HEADS, DIM_HEAD, MLP_DIM = 2, 4, 8, 64

    key = jax.random.PRNGKey(0)
    kx, kp = jax.random.split(key)
    x = jax.random.normal(kx, (B, N, DIM), jnp.float32)
    layers = init_params(kp, dim=DIM, depth=DEPTH, heads=HEADS,
                         dim_head=DIM_HEAD, mlp_dim=MLP_DIM)
    packed = pack_params(layers, heads=HEADS, dim_head=DIM_HEAD)

    fwd = jax.jit(functools.partial(transformer_forward, heads=HEADS, dim_head=DIM_HEAD))
    out = fwd(x, packed)
    jax.block_until_ready(out)
    assert out.shape == (B, N, DIM)

    # loose tolerance: kernel uses bf16 matmul operands + approx reciprocal
    ref = ref_forward(x, layers, heads=HEADS, dim_head=DIM_HEAD)
    err = float(jnp.max(jnp.abs(out - ref)))
    assert err < 0.25, f"numerical mismatch vs reference: max abs err {err}"
    print("KERNEL_OK")
</pallas_src>

<mosaic_0001>
module attributes {stable_mosaic.version = 11 : i64} {
  func.func @transformer_kernel(%arg0: i32, %arg1: i32, %arg2: memref<16x32xf32, #tpu.memory_space<vmem>>, %arg3: memref<1x1x32xf32, #tpu.memory_space<vmem>>, %arg4: memref<1x1x32xf32, #tpu.memory_space<vmem>>, %arg5: memref<1x32x96xbf16, #tpu.memory_space<vmem>>, %arg6: memref<1x32x32xbf16, #tpu.memory_space<vmem>>, %arg7: memref<1x1x32xf32, #tpu.memory_space<vmem>>, %arg8: memref<1x1x32xf32, #tpu.memory_space<vmem>>, %arg9: memref<1x1x32xf32, #tpu.memory_space<vmem>>, %arg10: memref<1x32x64xbf16, #tpu.memory_space<vmem>>, %arg11: memref<1x1x64xf32, #tpu.memory_space<vmem>>, %arg12: memref<1x64x32xbf16, #tpu.memory_space<vmem>>, %arg13: memref<1x1x32xf32, #tpu.memory_space<vmem>>, %arg14: memref<16x32xf32, #tpu.memory_space<vmem>>, %arg15: memref<16x32xf32, #tpu.memory_space<vmem>>, %arg16: memref<16x32xbf16, #tpu.memory_space<vmem>>) attributes {dimension_semantics = [#tpu.dimension_semantics<parallel>, #tpu.dimension_semantics<arbitrary>], iteration_bounds = array<i64: 1, 2>, scalar_prefetch = 0 : i64, scratch_operands = 2 : i64, tpu.core_type = #tpu.core_type<tc>, window_params = [{transform_indices = @transform_0, window_bounds = array<i64: 16, 32>}, {transform_indices = @transform_1, window_bounds = array<i64: 1, 1, 32>}, {transform_indices = @transform_2, window_bounds = array<i64: 1, 1, 32>}, {transform_indices = @transform_3, window_bounds = array<i64: 1, 32, 96>}, {transform_indices = @transform_4, window_bounds = array<i64: 1, 32, 32>}, {transform_indices = @transform_5, window_bounds = array<i64: 1, 1, 32>}, {transform_indices = @transform_6, window_bounds = array<i64: 1, 1, 32>}, {transform_indices = @transform_7, window_bounds = array<i64: 1, 1, 32>}, {transform_indices = @transform_8, window_bounds = array<i64: 1, 32, 64>}, {transform_indices = @transform_9, window_bounds = array<i64: 1, 1, 64>}, {transform_indices = @transform_10, window_bounds = array<i64: 1, 64, 32>}, {transform_indices = @transform_11, window_bounds = array<i64: 1, 1, 32>}, {transform_indices = @transform_12, window_bounds = array<i64: 16, 32>}]} {
    %c0_i32 = arith.constant 0 : i32
    %0 = arith.cmpi eq, %arg1, %c0_i32 : i32
    %1 = arith.extui %0 : i1 to i32
    %c0_i32_0 = arith.constant 0 : i32
    %2 = arith.cmpi ne, %1, %c0_i32_0 : i32
    scf.if %2 {
      %c0_77 = arith.constant 0 : index
      %c0_78 = arith.constant 0 : index
      %187 = vector.load %arg2[%c0_77, %c0_78] : memref<16x32xf32, #tpu.memory_space<vmem>>, vector<16x32xf32>
      %c0_79 = arith.constant 0 : index
      %c0_80 = arith.constant 0 : index
      %188 = vector.load %arg15[%c0_79, %c0_80] : memref<16x32xf32, #tpu.memory_space<vmem>>, vector<16x32xf32>
      tpu.vector_store %arg15[%c0_79, %c0_80], %187 {strides = array<i32>} : memref<16x32xf32, #tpu.memory_space<vmem>>, vector<16x32xf32>,
    } else {
    }
    %c0 = arith.constant 0 : index
    %c0_1 = arith.constant 0 : index
    %3 = vector.load %arg15[%c0, %c0_1] : memref<16x32xf32, #tpu.memory_space<vmem>>, vector<16x32xf32>
    %c0_2 = arith.constant 0 : index
    %c0_3 = arith.constant 0 : index
    %c0_4 = arith.constant 0 : index
    %4 = vector.load %arg3[%c0_2, %c0_3, %c0_4] : memref<1x1x32xf32, #tpu.memory_space<vmem>>, vector<1x1x32xf32>
    %5 = vector.shape_cast %4 : vector<1x1x32xf32> to vector<1x32xf32>
    %c0_5 = arith.constant 0 : index
    %c0_6 = arith.constant 0 : index
    %c0_7 = arith.constant 0 : index
    %6 = vector.load %arg4[%c0_5, %c0_6, %c0_7] : memref<1x1x32xf32, #tpu.memory_space<vmem>>, vector<1x1x32xf32>
    %7 = vector.shape_cast %6 : vector<1x1x32xf32> to vector<1x32xf32>
    %cst = arith.constant dense<0.000000e+00> : vector<16xf32>
    %8 = vector.multi_reduction <add>, %3, %cst [1] : vector<16x32xf32> to vector<16xf32>
    %9 = vector.shape_cast %8 : vector<16xf32> to vector<16x1xf32>
    %cst_8 = arith.constant 3.200000e+01 : f32
    %10 = vector.broadcast %cst_8 : f32 to vector<16x1xf32>
    %11 = arith.divf %9, %10 : vector<16x1xf32>
    %12 = vector.broadcast %11 : vector<16x1xf32> to vector<16x32xf32>
    %13 = arith.subf %3, %12 : vector<16x32xf32>
    %14 = arith.mulf %13, %13 : vector<16x32xf32>
    %cst_9 = arith.constant dense<0.000000e+00> : vector<16xf32>
    %15 = vector.multi_reduction <add>, %14, %cst_9 [1] : vector<16x32xf32> to vector<16xf32>
    %16 = vector.shape_cast %15 : vector<16xf32> to vector<16x1xf32>
    %cst_10 = arith.constant 3.200000e+01 : f32
    %17 = vector.broadcast %cst_10 : f32 to vector<16x1xf32>
    %18 = arith.divf %16, %17 : vector<16x1xf32>
    %19 = vector.broadcast %11 : vector<16x1xf32> to vector<16x32xf32>
    %20 = arith.subf %3, %19 : vector<16x32xf32>
    %cst_11 = arith.constant 9.99999974E-6 : f32
    %21 = vector.broadcast %cst_11 : f32 to vector<16x1xf32>
    %22 = arith.addf %18, %21 : vector<16x1xf32>
    %23 = math.rsqrt %22 : vector<16x1xf32>
    %24 = vector.broadcast %23 : vector<16x1xf32> to vector<16x32xf32>
    %25 = arith.mulf %20, %24 : vector<16x32xf32>
    %26 = vector.broadcast %5 : vector<1x32xf32> to vector<16x32xf32>
    %27 = arith.mulf %25, %26 : vector<16x32xf32>
    %28 = vector.broadcast %7 : vector<1x32xf32> to vector<16x32xf32>
    %29 = arith.addf %27, %28 : vector<16x32xf32>
    %30 = arith.truncf %29 : vector<16x32xf32> to vector<16x32xbf16>
    %c0_12 = arith.constant 0 : index
    %c0_13 = arith.constant 0 : index
    %c0_14 = arith.constant 0 : index
    %31 = vector.load %arg5[%c0_12, %c0_13, %c0_14] : memref<1x32x96xbf16, #tpu.memory_space<vmem>>, vector<1x32x96xbf16>
    %32 = vector.shape_cast %31 : vector<1x32x96xbf16> to vector<32x96xbf16>
    %cst_15 = arith.constant dense<0.000000e+00> : vector<16x96xf32>
    %33 = tpu.matmul %30, %32, %cst_15 {dimension_numbers = #tpu.dot_dimension_numbers<[1], [0], [0], [1], [0, 0, 1, 1], [], []>} : vector<16x32xbf16>, vector<32x96xbf16>, vector<16x96xf32> -> vector<16x96xf32>
    %34 = arith.truncf %33 : vector<16x96xf32> to vector<16x96xbf16>
    %35 = vector.extract_strided_slice %34 {offsets = [0, 0], sizes = [16, 8], strides = [1, 1]} : vector<16x96xbf16> to vector<16x8xbf16>
    %36 = vector.shape_cast %35 : vector<16x8xbf16> to vector<2x8x8xbf16>
    %37 = vector.extract_strided_slice %34 {offsets = [0, 32], sizes = [16, 8], strides = [1, 1]} : vector<16x96xbf16> to vector<16x8xbf16>
    %38 = vector.shape_cast %37 : vector<16x8xbf16> to vector<2x8x8xbf16>
    %39 = vector.extract_strided_slice %34 {offsets = [0, 64], sizes = [16, 8], strides = [1, 1]} : vector<16x96xbf16> to vector<16x8xbf16>
    %40 = vector.shape_cast %39 : vector<16x8xbf16> to vector<2x8x8xbf16>
    "tpu.trace_start"() <{level = 10 : i32, message = "bid,bjd->bij"}> : () -> ()
    %cst_16 = arith.constant dense<0.000000e+00> : vector<2x8x8xf32>
    %41 = tpu.matmul %36, %38, %cst_16 {dimension_numbers = #tpu.dot_dimension_numbers<[2], [2], [1], [1], [0, 0, 0, 1, 1, 1], [0], [0]>} : vector<2x8x8xbf16>, vector<2x8x8xbf16>, vector<2x8x8xf32> -> vector<2x8x8xf32>
    "tpu.trace_stop"() : () -> ()
    %cst_17 = arith.constant dense<0xFF800000> : vector<2x8xf32>
    %42 = vector.multi_reduction <maximumf>, %41, %cst_17 [2] : vector<2x8x8xf32> to vector<2x8xf32>
    %43 = vector.shape_cast %42 : vector<2x8xf32> to vector<2x8x1xf32>
    %44 = vector.broadcast %43 : vector<2x8x1xf32> to vector<2x8x8xf32>
    %45 = arith.subf %41, %44 : vector<2x8x8xf32>
    %46 = math.exp %45 : vector<2x8x8xf32>
    %cst_18 = arith.constant dense<0.000000e+00> : vector<2x8xf32>
    %47 = vector.multi_reduction <add>, %46, %cst_18 [2] : vector<2x8x8xf32> to vector<2x8xf32>
    %48 = vector.shape_cast %47 : vector<2x8xf32> to vector<2x8x1xf32>
    %49 = tpu.reciprocal %48 {approx = true} : vector<2x8x1xf32> -> vector<2x8x1xf32>
    %50 = vector.broadcast %49 : vector<2x8x1xf32> to vector<2x8x8xf32>
    %51 = arith.mulf %46, %50 : vector<2x8x8xf32>
    %52 = arith.truncf %51 : vector<2x8x8xf32> to vector<2x8x8xbf16>
    "tpu.trace_start"() <{level = 10 : i32, message = "bij,bjd->bid"}> : () -> ()
    %cst_19 = arith.constant dense<0.000000e+00> : vector<2x8x8xf32>
    %53 = tpu.matmul %52, %40, %cst_19 {dimension_numbers = #tpu.dot_dimension_numbers<[2], [1], [1], [2], [0, 0, 0, 1, 1, 2], [0], [0]>} : vector<2x8x8xbf16>, vector<2x8x8xbf16>, vector<2x8x8xf32> -> vector<2x8x8xf32>
    "tpu.trace_stop"() : () -> ()
    %54 = vector.shape_cast %53 : vector<2x8x8xf32> to vector<16x8xf32>
    %55 = arith.truncf %54 : vector<16x8xf32> to vector<16x8xbf16>
    %c0_20 = arith.constant 0 : index
    %c0_21 = arith.constant 0 : index
    %56 = vector.load %arg16[%c0_20, %c0_21] : memref<16x32xbf16, #tpu.memory_space<vmem>>, vector<16x8xbf16>
    tpu.vector_store %arg16[%c0_20, %c0_21], %55 {strides = array<i32>} : memref<16x32xbf16, #tpu.memory_space<vmem>>, vector<16x8xbf16>,
    %57 = vector.extract_strided_slice %34 {offsets = [0, 8], sizes = [16, 8], strides = [1, 1]} : vector<16x96xbf16> to vector<16x8xbf16>
    %58 = vector.shape_cast %57 : vector<16x8xbf16> to vector<2x8x8xbf16>
    %59 = vector.extract_strided_slice %34 {offsets = [0, 40], sizes = [16, 8], strides = [1, 1]} : vector<16x96xbf16> to vector<16x8xbf16>
    %60 = vector.shape_cast %59 : vector<16x8xbf16> to vector<2x8x8xbf16>
    %61 = vector.extract_strided_slice %34 {offsets = [0, 72], sizes = [16, 8], strides = [1, 1]} : vector<16x96xbf16> to vector<16x8xbf16>
    %62 = vector.shape_cast %61 : vector<16x8xbf16> to vector<2x8x8xbf16>
    "tpu.trace_start"() <{level = 10 : i32, message = "bid,bjd->bij"}> : () -> ()
    %cst_22 = arith.constant dense<0.000000e+00> : vector<2x8x8xf32>
    %63 = tpu.matmul %58, %60, %cst_22 {dimension_numbers = #tpu.dot_dimension_numbers<[2], [2], [1], [1], [0, 0, 0, 1, 1, 1], [0], [0]>} : vector<2x8x8xbf16>, vector<2x8x8xbf16>, vector<2x8x8xf32> -> vector<2x8x8xf32>
    "tpu.trace_stop"() : () -> ()
    %cst_23 = arith.constant dense<0xFF800000> : vector<2x8xf32>
    %64 = vector.multi_reduction <maximumf>, %63, %cst_23 [2] : vector<2x8x8xf32> to vector<2x8xf32>
    %65 = vector.shape_cast %64 : vector<2x8xf32> to vector<2x8x1xf32>
    %66 = vector.broadcast %65 : vector<2x8x1xf32> to vector<2x8x8xf32>
    %67 = arith.subf %63, %66 : vector<2x8x8xf32>
    %68 = math.exp %67 : vector<2x8x8xf32>
    %cst_24 = arith.constant dense<0.000000e+00> : vector<2x8xf32>
    %69 = vector.multi_reduction <add>, %68, %cst_24 [2] : vector<2x8x8xf32> to vector<2x8xf32>
    %70 = vector.shape_cast %69 : vector<2x8xf32> to vector<2x8x1xf32>
    %71 = tpu.reciprocal %70 {approx = true} : vector<2x8x1xf32> -> vector<2x8x1xf32>
    %72 = vector.broadcast %71 : vector<2x8x1xf32> to vector<2x8x8xf32>
    %73 = arith.mulf %68, %72 : vector<2x8x8xf32>
    %74 = arith.truncf %73 : vector<2x8x8xf32> to vector<2x8x8xbf16>
    "tpu.trace_start"() <{level = 10 : i32, message = "bij,bjd->bid"}> : () -> ()
    %cst_25 = arith.constant dense<0.000000e+00> : vector<2x8x8xf32>
    %75 = tpu.matmul %74, %62, %cst_25 {dimension_numbers = #tpu.dot_dimension_numbers<[2], [1], [1], [2], [0, 0, 0, 1, 1, 2], [0], [0]>} : vector<2x8x8xbf16>, vector<2x8x8xbf16>, vector<2x8x8xf32> -> vector<2x8x8xf32>
    "tpu.trace_stop"() : () -> ()
    %76 = vector.shape_cast %75 : vector<2x8x8xf32> to vector<16x8xf32>
    %77 = arith.truncf %76 : vector<16x8xf32> to vector<16x8xbf16>
    %c0_26 = arith.constant 0 : index
    %c8 = arith.constant 8 : index
    %78 = vector.load %arg16[%c0_26, %c8] : memref<16x32xbf16, #tpu.memory_space<vmem>>, vector<16x8xbf16>
    tpu.vector_store %arg16[%c0_26, %c8], %77 {strides = array<i32>} : memref<16x32xbf16, #tpu.memory_space<vmem>>, vector<16x8xbf16>,
    %79 = vector.extract_strided_slice %34 {offsets = [0, 16], sizes = [16, 8], strides = [1, 1]} : vector<16x96xbf16> to vector<16x8xbf16>
    %80 = vector.shape_cast %79 : vector<16x8xbf16> to vector<2x8x8xbf16>
    %81 = vector.extract_strided_slice %34 {offsets = [0, 48], sizes = [16, 8], strides = [1, 1]} : vector<16x96xbf16> to vector<16x8xbf16>
    %82 = vector.shape_cast %81 : vector<16x8xbf16> to vector<2x8x8xbf16>
    %83 = vector.extract_strided_slice %34 {offsets = [0, 80], sizes = [16, 8], strides = [1, 1]} : vector<16x96xbf16> to vector<16x8xbf16>
    %84 = vector.shape_cast %83 : vector<16x8xbf16> to vector<2x8x8xbf16>
    "tpu.trace_start"() <{level = 10 : i32, message = "bid,bjd->bij"}> : () -> ()
    %cst_27 = arith.constant dense<0.000000e+00> : vector<2x8x8xf32>
    %85 = tpu.matmul %80, %82, %cst_27 {dimension_numbers = #tpu.dot_dimension_numbers<[2], [2], [1], [1], [0, 0, 0, 1, 1, 1], [0], [0]>} : vector<2x8x8xbf16>, vector<2x8x8xbf16>, vector<2x8x8xf32> -> vector<2x8x8xf32>
    "tpu.trace_stop"() : () -> ()
    %cst_28 = arith.constant dense<0xFF800000> : vector<2x8xf32>
    %86 = vector.multi_reduction <maximumf>, %85, %cst_28 [2] : vector<2x8x8xf32> to vector<2x8xf32>
    %87 = vector.shape_cast %86 : vector<2x8xf32> to vector<2x8x1xf32>
    %88 = vector.broadcast %87 : vector<2x8x1xf32> to vector<2x8x8xf32>
    %89 = arith.subf %85, %88 : vector<2x8x8xf32>
    %90 = math.exp %89 : vector<2x8x8xf32>
    %cst_29 = arith.constant dense<0.000000e+00> : vector<2x8xf32>
    %91 = vector.multi_reduction <add>, %90, %cst_29 [2] : vector<2x8x8xf32> to vector<2x8xf32>
    %92 = vector.shape_cast %91 : vector<2x8xf32> to vector<2x8x1xf32>
    %93 = tpu.reciprocal %92 {approx = true} : vector<2x8x1xf32> -> vector<2x8x1xf32>
    %94 = vector.broadcast %93 : vector<2x8x1xf32> to vector<2x8x8xf32>
    %95 = arith.mulf %90, %94 : vector<2x8x8xf32>
    %96 = arith.truncf %95 : vector<2x8x8xf32> to vector<2x8x8xbf16>
    "tpu.trace_start"() <{level = 10 : i32, message = "bij,bjd->bid"}> : () -> ()
    %cst_30 = arith.constant dense<0.000000e+00> : vector<2x8x8xf32>
    %97 = tpu.matmul %96, %84, %cst_30 {dimension_numbers = #tpu.dot_dimension_numbers<[2], [1], [1], [2], [0, 0, 0, 1, 1, 2], [0], [0]>} : vector<2x8x8xbf16>, vector<2x8x8xbf16>, vector<2x8x8xf32> -> vector<2x8x8xf32>
    "tpu.trace_stop"() : () -> ()
    %98 = vector.shape_cast %97 : vector<2x8x8xf32> to vector<16x8xf32>
    %99 = arith.truncf %98 : vector<16x8xf32> to vector<16x8xbf16>
    %c0_31 = arith.constant 0 : index
    %c16 = arith.constant 16 : index
    %100 = vector.load %arg16[%c0_31, %c16] : memref<16x32xbf16, #tpu.memory_space<vmem>>, vector<16x8xbf16>
    tpu.vector_store %arg16[%c0_31, %c16], %99 {strides = array<i32>} : memref<16x32xbf16, #tpu.memory_space<vmem>>, vector<16x8xbf16>,
    %101 = vector.extract_strided_slice %34 {offsets = [0, 24], sizes = [16, 8], strides = [1, 1]} : vector<16x96xbf16> to vector<16x8xbf16>
    %102 = vector.shape_cast %101 : vector<16x8xbf16> to vector<2x8x8xbf16>
    %103 = vector.extract_strided_slice %34 {offsets = [0, 56], sizes = [16, 8], strides = [1, 1]} : vector<16x96xbf16> to vector<16x8xbf16>
    %104 = vector.shape_cast %103 : vector<16x8xbf16> to vector<2x8x8xbf16>
    %105 = vector.extract_strided_slice %34 {offsets = [0, 88], sizes = [16, 8], strides = [1, 1]} : vector<16x96xbf16> to vector<16x8xbf16>
    %106 = vector.shape_cast %105 : vector<16x8xbf16> to vector<2x8x8xbf16>
    "tpu.trace_start"() <{level = 10 : i32, message = "bid,bjd->bij"}> : () -> ()
    %cst_32 = arith.constant dense<0.000000e+00> : vector<2x8x8xf32>
    %107 = tpu.matmul %102, %104, %cst_32 {dimension_numbers = #tpu.dot_dimension_numbers<[2], [2], [1], [1], [0, 0, 0, 1, 1, 1], [0], [0]>} : vector<2x8x8xbf16>, vector<2x8x8xbf16>, vector<2x8x8xf32> -> vector<2x8x8xf32>
    "tpu.trace_stop"() : () -> ()
    %cst_33 = arith.constant dense<0xFF800000> : vector<2x8xf32>
    %108 = vector.multi_reduction <maximumf>, %107, %cst_33 [2] : vector<2x8x8xf32> to vector<2x8xf32>
    %109 = vector.shape_cast %108 : vector<2x8xf32> to vector<2x8x1xf32>
    %110 = vector.broadcast %109 : vector<2x8x1xf32> to vector<2x8x8xf32>
    %111 = arith.subf %107, %110 : vector<2x8x8xf32>
    %112 = math.exp %111 : vector<2x8x8xf32>
    %cst_34 = arith.constant dense<0.000000e+00> : vector<2x8xf32>
    %113 = vector.multi_reduction <add>, %112, %cst_34 [2] : vector<2x8x8xf32> to vector<2x8xf32>
    %114 = vector.shape_cast %113 : vector<2x8xf32> to vector<2x8x1xf32>
    %115 = tpu.reciprocal %114 {approx = true} : vector<2x8x1xf32> -> vector<2x8x1xf32>
    %116 = vector.broadcast %115 : vector<2x8x1xf32> to vector<2x8x8xf32>
    %117 = arith.mulf %112, %116 : vector<2x8x8xf32>
    %118 = arith.truncf %117 : vector<2x8x8xf32> to vector<2x8x8xbf16>
    "tpu.trace_start"() <{level = 10 : i32, message = "bij,bjd->bid"}> : () -> ()
    %cst_35 = arith.constant dense<0.000000e+00> : vector<2x8x8xf32>
    %119 = tpu.matmul %118, %106, %cst_35 {dimension_numbers = #tpu.dot_dimension_numbers<[2], [1], [1], [2], [0, 0, 0, 1, 1, 2], [0], [0]>} : vector<2x8x8xbf16>, vector<2x8x8xbf16>, vector<2x8x8xf32> -> vector<2x8x8xf32>
    "tpu.trace_stop"() : () -> ()
    %120 = vector.shape_cast %119 : vector<2x8x8xf32> to vector<16x8xf32>
    %121 = arith.truncf %120 : vector<16x8xf32> to vector<16x8xbf16>
    %c0_36 = arith.constant 0 : index
    %c24 = arith.constant 24 : index
    %122 = vector.load %arg16[%c0_36, %c24] : memref<16x32xbf16, #tpu.memory_space<vmem>>, vector<16x8xbf16>
    tpu.vector_store %arg16[%c0_36, %c24], %121 {strides = array<i32>} : memref<16x32xbf16, #tpu.memory_space<vmem>>, vector<16x8xbf16>,
    %c0_37 = arith.constant 0 : index
    %c0_38 = arith.constant 0 : index
    %123 = vector.load %arg16[%c0_37, %c0_38] : memref<16x32xbf16, #tpu.memory_space<vmem>>, vector<16x32xbf16>
    %c0_39 = arith.constant 0 : index
    %c0_40 = arith.constant 0 : index
    %c0_41 = arith.constant 0 : index
    %124 = vector.load %arg6[%c0_39, %c0_40, %c0_41] : memref<1x32x32xbf16, #tpu.memory_space<vmem>>, vector<1x32x32xbf16>
    %125 = vector.shape_cast %124 : vector<1x32x32xbf16> to vector<32x32xbf16>
    %cst_42 = arith.constant dense<0.000000e+00> : vector<16x32xf32>
    %126 = tpu.matmul %123, %125, %cst_42 {dimension_numbers = #tpu.dot_dimension_numbers<[1], [0], [0], [1], [0, 0, 1, 1], [], []>} : vector<16x32xbf16>, vector<32x32xbf16>, vector<16x32xf32> -> vector<16x32xf32>
    %c0_43 = arith.constant 0 : index
    %c0_44 = arith.constant 0 : index
    %c0_45 = arith.constant 0 : index
    %127 = vector.load %arg7[%c0_43, %c0_44, %c0_45] : memref<1x1x32xf32, #tpu.memory_space<vmem>>, vector<1x1x32xf32>
    %128 = vector.shape_cast %127 : vector<1x1x32xf32> to vector<1x32xf32>
    %129 = vector.broadcast %128 : vector<1x32xf32> to vector<16x32xf32>
    %130 = arith.addf %126, %129 : vector<16x32xf32>
    %131 = arith.addf %3, %130 : vector<16x32xf32>
    %c0_46 = arith.constant 0 : index
    %c0_47 = arith.constant 0 : index
    %c0_48 = arith.constant 0 : index
    %132 = vector.load %arg8[%c0_46, %c0_47, %c0_48] : memref<1x1x32xf32, #tpu.memory_space<vmem>>, vector<1x1x32xf32>
    %133 = vector.shape_cast %132 : vector<1x1x32xf32> to vector<1x32xf32>
    %c0_49 = arith.constant 0 : index
    %c0_50 = arith.constant 0 : index
    %c0_51 = arith.constant 0 : index
    %134 = vector.load %arg9[%c0_49, %c0_50, %c0_51] : memref<1x1x32xf32, #tpu.memory_space<vmem>>, vector<1x1x32xf32>
    %135 = vector.shape_cast %134 : vector<1x1x32xf32> to vector<1x32xf32>
    %cst_52 = arith.constant dense<0.000000e+00> : vector<16xf32>
    %136 = vector.multi_reduction <add>, %131, %cst_52 [1] : vector<16x32xf32> to vector<16xf32>
    %137 = vector.shape_cast %136 : vector<16xf32> to vector<16x1xf32>
    %cst_53 = arith.constant 3.200000e+01 : f32
    %138 = vector.broadcast %cst_53 : f32 to vector<16x1xf32>
    %139 = arith.divf %137, %138 : vector<16x1xf32>
    %140 = vector.broadcast %139 : vector<16x1xf32> to vector<16x32xf32>
    %141 = arith.subf %131, %140 : vector<16x32xf32>
    %142 = arith.mulf %141, %141 : vector<16x32xf32>
    %cst_54 = arith.constant dense<0.000000e+00> : vector<16xf32>
    %143 = vector.multi_reduction <add>, %142, %cst_54 [1] : vector<16x32xf32> to vector<16xf32>
    %144 = vector.shape_cast %143 : vector<16xf32> to vector<16x1xf32>
    %cst_55 = arith.constant 3.200000e+01 : f32
    %145 = vector.broadcast %cst_55 : f32 to vector<16x1xf32>
    %146 = arith.divf %144, %145 : vector<16x1xf32>
    %147 = vector.broadcast %139 : vector<16x1xf32> to vector<16x32xf32>
    %148 = arith.subf %131, %147 : vector<16x32xf32>
    %cst_56 = arith.constant 9.99999974E-6 : f32
    %149 = vector.broadcast %cst_56 : f32 to vector<16x1xf32>
    %150 = arith.addf %146, %149 : vector<16x1xf32>
    %151 = math.rsqrt %150 : vector<16x1xf32>
    %152 = vector.broadcast %151 : vector<16x1xf32> to vector<16x32xf32>
    %153 = arith.mulf %148, %152 : vector<16x32xf32>
    %154 = vector.broadcast %133 : vector<1x32xf32> to vector<16x32xf32>
    %155 = arith.mulf %153, %154 : vector<16x32xf32>
    %156 = vector.broadcast %135 : vector<1x32xf32> to vector<16x32xf32>
    %157 = arith.addf %155, %156 : vector<16x32xf32>
    %158 = arith.truncf %157 : vector<16x32xf32> to vector<16x32xbf16>
    %c0_57 = arith.constant 0 : index
    %c0_58 = arith.constant 0 : index
    %c0_59 = arith.constant 0 : index
    %159 = vector.load %arg10[%c0_57, %c0_58, %c0_59] : memref<1x32x64xbf16, #tpu.memory_space<vmem>>, vector<1x32x64xbf16>
    %160 = vector.shape_cast %159 : vector<1x32x64xbf16> to vector<32x64xbf16>
    %cst_60 = arith.constant dense<0.000000e+00> : vector<16x64xf32>
    %161 = tpu.matmul %158, %160, %cst_60 {dimension_numbers = #tpu.dot_dimension_numbers<[1], [0], [0], [1], [0, 0, 1, 1], [], []>} : vector<16x32xbf16>, vector<32x64xbf16>, vector<16x64xf32> -> vector<16x64xf32>
    %c0_61 = arith.constant 0 : index
    %c0_62 = arith.constant 0 : index
    %c0_63 = arith.constant 0 : index
    %162 = vector.load %arg11[%c0_61, %c0_62, %c0_63] : memref<1x1x64xf32, #tpu.memory_space<vmem>>, vector<1x1x64xf32>
    %163 = vector.shape_cast %162 : vector<1x1x64xf32> to vector<1x64xf32>
    %164 = vector.broadcast %163 : vector<1x64xf32> to vector<16x64xf32>
    %165 = arith.addf %161, %164 : vector<16x64xf32>
    %cst_64 = arith.constant 5.000000e-01 : f32
    %166 = vector.broadcast %cst_64 : f32 to vector<16x64xf32>
    %167 = arith.mulf %166, %165 : vector<16x64xf32>
    %cst_65 = arith.constant 0.707106769 : f32
    %168 = vector.broadcast %cst_65 : f32 to vector<16x64xf32>
    %169 = arith.mulf %165, %168 : vector<16x64xf32>
    %170 = math.erf %169 : vector<16x64xf32>
    %cst_66 = arith.constant 1.000000e+00 : f32
    %171 = vector.broadcast %cst_66 : f32 to vector<16x64xf32>
    %172 = arith.addf %171, %170 : vector<16x64xf32>
    %173 = arith.mulf %167, %172 : vector<16x64xf32>
    %174 = arith.truncf %173 : vector<16x64xf32> to vector<16x64xbf16>
    %c0_67 = arith.constant 0 : index
    %c0_68 = arith.constant 0 : index
    %c0_69 = arith.constant 0 : index
    %175 = vector.load %arg12[%c0_67, %c0_68, %c0_69] : memref<1x64x32xbf16, #tpu.memory_space<vmem>>, vector<1x64x32xbf16>
    %176 = vector.shape_cast %175 : vector<1x64x32xbf16> to vector<64x32xbf16>
    %cst_70 = arith.constant dense<0.000000e+00> : vector<16x32xf32>
    %177 = tpu.matmul %174, %176, %cst_70 {dimension_numbers = #tpu.dot_dimension_numbers<[1], [0], [0], [1], [0, 0, 1, 1], [], []>} : vector<16x64xbf16>, vector<64x32xbf16>, vector<16x32xf32> -> vector<16x32xf32>
    %c0_71 = arith.constant 0 : index
    %c0_72 = arith.constant 0 : index
    %c0_73 = arith.constant 0 : index
    %178 = vector.load %arg13[%c0_71, %c0_72, %c0_73] : memref<1x1x32xf32, #tpu.memory_space<vmem>>, vector<1x1x32xf32>
    %179 = vector.shape_cast %178 : vector<1x1x32xf32> to vector<1x32xf32>
    %180 = vector.broadcast %179 : vector<1x32xf32> to vector<16x32xf32>
    %181 = arith.addf %177, %180 : vector<16x32xf32>
    %182 = arith.addf %131, %181 : vector<16x32xf32>
    %c0_74 = arith.constant 0 : index
    %c0_75 = arith.constant 0 : index
    %183 = vector.load %arg15[%c0_74, %c0_75] : memref<16x32xf32, #tpu.memory_space<vmem>>, vector<16x32xf32>
    tpu.vector_store %arg15[%c0_74, %c0_75], %182 {strides = array<i32>} : memref<16x32xf32, #tpu.memory_space<vmem>>, vector<16x32xf32>,
    %c1_i32 = arith.constant 1 : i32
    %184 = arith.cmpi eq, %arg1, %c1_i32 : i32
    %185 = arith.extui %184 : i1 to i32
    %c0_i32_76 = arith.constant 0 : i32
    %186 = arith.cmpi ne, %185, %c0_i32_76 : i32
    scf.if %186 {
      %c0_77 = arith.constant 0 : index
      %c0_78 = arith.constant 0 : index
      %187 = vector.load %arg15[%c0_77, %c0_78] : memref<16x32xf32, #tpu.memory_space<vmem>>, vector<16x32xf32>
      %c0_79 = arith.constant 0 : index
      %c0_80 = arith.constant 0 : index
      %188 = vector.load %arg14[%c0_79, %c0_80] : memref<16x32xf32, #tpu.memory_space<vmem>>, vector<16x32xf32>
      tpu.vector_store %arg14[%c0_79, %c0_80], %187 {strides = array<i32>} : memref<16x32xf32, #tpu.memory_space<vmem>>, vector<16x32xf32>,
    } else {
    }
    return
  }
  func.func @transform_0(%arg0: i32, %arg1: i32) -> (i32, i32) {
    %c0_i32 = arith.constant 0 : i32
    %c0_i32_0 = arith.constant 0 : i32
    return %arg0, %c0_i32 : i32, i32
  }
  func.func @transform_1(%arg0: i32, %arg1: i32) -> (i32, i32, i32) {
    %c0_i32 = arith.constant 0 : i32
    %c0_i32_0 = arith.constant 0 : i32
    %c0_i32_1 = arith.constant 0 : i32
    return %arg1, %c0_i32, %c0_i32_0 : i32, i32, i32
  }
  func.func @transform_2(%arg0: i32, %arg1: i32) -> (i32, i32, i32) {
    %c0_i32 = arith.constant 0 : i32
    %c0_i32_0 = arith.constant 0 : i32
    %c0_i32_1 = arith.constant 0 : i32
    return %arg1, %c0_i32, %c0_i32_0 : i32, i32, i32
  }
  func.func @transform_3(%arg0: i32, %arg1: i32) -> (i32, i32, i32) {
    %c0_i32 = arith.constant 0 : i32
    %c0_i32_0 = arith.constant 0 : i32
    %c0_i32_1 = arith.constant 0 : i32
    return %arg1, %c0_i32, %c0_i32_0 : i32, i32, i32
  }
  func.func @transform_4(%arg0: i32, %arg1: i32) -> (i32, i32, i32) {
    %c0_i32 = arith.constant 0 : i32
    %c0_i32_0 = arith.constant 0 : i32
    %c0_i32_1 = arith.constant 0 : i32
    return %arg1, %c0_i32, %c0_i32_0 : i32, i32, i32
  }
  func.func @transform_5(%arg0: i32, %arg1: i32) -> (i32, i32, i32) {
    %c0_i32 = arith.constant 0 : i32
    %c0_i32_0 = arith.constant 0 : i32
    %c0_i32_1 = arith.constant 0 : i32
    return %arg1, %c0_i32, %c0_i32_0 : i32, i32, i32
  }
  func.func @transform_6(%arg0: i32, %arg1: i32) -> (i32, i32, i32) {
    %c0_i32 = arith.constant 0 : i32
    %c0_i32_0 = arith.constant 0 : i32
    %c0_i32_1 = arith.constant 0 : i32
    return %arg1, %c0_i32, %c0_i32_0 : i32, i32, i32
  }
  func.func @transform_7(%arg0: i32, %arg1: i32) -> (i32, i32, i32) {
    %c0_i32 = arith.constant 0 : i32
    %c0_i32_0 = arith.constant 0 : i32
    %c0_i32_1 = arith.constant 0 : i32
    return %arg1, %c0_i32, %c0_i32_0 : i32, i32, i32
  }
  func.func @transform_8(%arg0: i32, %arg1: i32) -> (i32, i32, i32) {
    %c0_i32 = arith.constant 0 : i32
    %c0_i32_0 = arith.constant 0 : i32
    %c0_i32_1 = arith.constant 0 : i32
    return %arg1, %c0_i32, %c0_i32_0 : i32, i32, i32
  }
  func.func @transform_9(%arg0: i32, %arg1: i32) -> (i32, i32, i32) {
    %c0_i32 = arith.constant 0 : i32
    %c0_i32_0 = arith.constant 0 : i32
    %c0_i32_1 = arith.constant 0 : i32
    return %arg1, %c0_i32, %c0_i32_0 : i32, i32, i32
  }
  func.func @transform_10(%arg0: i32, %arg1: i32) -> (i32, i32, i32) {
    %c0_i32 = arith.constant 0 : i32
    %c0_i32_0 = arith.constant 0 : i32
    %c0_i32_1 = arith.constant 0 : i32
    return %arg1, %c0_i32, %c0_i32_0 : i32, i32, i32
  }
  func.func @transform_11(%arg0: i32, %arg1: i32) -> (i32, i32, i32) {
    %c0_i32 = arith.constant 0 : i32
    %c0_i32_0 = arith.constant 0 : i32
    %c0_i32_1 = arith.constant 0 : i32
    return %arg1, %c0_i32, %c0_i32_0 : i32, i32, i32
  }
  func.func @transform_12(%arg0: i32, %arg1: i32) -> (i32, i32) {
    %c0_i32 = arith.constant 0 : i32
    %c0_i32_0 = arith.constant 0 : i32
    return %arg0, %c0_i32 : i32, i32
  }
}

</mosaic_0001>

<llo_original>
// kernel: transformer_forward.1
$region0: #{transformer_forward.1}
  #allocation0 [shape = 'u32[]', space=smem, size = 0x4, offset = 0x4, fixed_abs, tag = 'smem constant byte address 0x4 - core index']
  #allocation1 [shape = 'u32[144,128]{1,0:T(1,128)}', space=vmem, size = 0x12000, scoped, tag = 'internal scratch']
  #allocation2 [shape = 'f32[16,32]{1,0:T(8,128)}', space=vmem, size = 0x2000, scoped, tag = 'scratch operand']
  #allocation3 [shape = 'bf16[16,32]{1,0:T(16,128)(2,1)}', space=vmem, size = 0x1000, scoped, tag = 'scratch operand']
  %s0 = inlined_call_operand.hbm [shape: f32[16,32], index: 0, kind: input, shape index: {}]
  %s1 = inlined_call_operand.vmem [shape: f32[2,1,32], index: 1, kind: input, shape index: {}]
  %s2 = inlined_call_operand.vmem [shape: f32[2,1,32], index: 2, kind: input, shape index: {}]
  %s3 = inlined_call_operand.vmem [shape: bf16[2,32,96], index: 3, kind: input, shape index: {}]
  %s4 = inlined_call_operand.vmem [shape: bf16[2,32,32], index: 4, kind: input, shape index: {}]
  %s5 = inlined_call_operand.hbm [shape: f32[2,1,32], index: 5, kind: input, shape index: {}]
  %s6 = inlined_call_operand.hbm [shape: f32[2,1,32], index: 6, kind: input, shape index: {}]
  %s7 = inlined_call_operand.hbm [shape: f32[2,1,32], index: 7, kind: input, shape index: {}]
  %s8 = inlined_call_operand.vmem [shape: bf16[2,32,64], index: 8, kind: input, shape index: {}]
  %s9 = inlined_call_operand.hbm [shape: f32[2,1,64], index: 9, kind: input, shape index: {}]
  %s10 = inlined_call_operand.vmem [shape: bf16[2,64,32], index: 10, kind: input, shape index: {}]
  %s11 = inlined_call_operand.hbm [shape: f32[2,1,32], index: 11, kind: input, shape index: {}]
  %s12 = inlined_call_operand.hbm [shape: f32[16,32], index: 12, kind: output, shape index: {}]
  %s13 = sld [smem:[#allocation0]]
  $region113: #{transformer_forward.1} parent=0
    _
  %s15 = ssub.s32 1, %s13
  %s16 = scalar_select 0, %s15, %s13
  $region1: #{transformer_forward.1} parent=0
    #allocation4 [shape = 'u8[8192]{0}', space=vmem, size = 0x2000, scoped, tag = 'input window, operand 0, single buffered']
    #allocation5 [shape = 's32[2]{0}', space=sflag, size = 0x8, scoped, tag = 'scoped memory for transformer_forward.1']
    #allocation6 [shape = 's32[2]{0}', space=sflag, size = 0x8, scoped, tag = 'scoped memory for transformer_forward.1']
    #allocation7 [shape = 'u8[1024]{0}', space=vmem, size = 0x400, scoped, tag = 'input window, operand 5']
    #allocation8 [shape = 's32[2]{0}', space=sflag, size = 0x8, scoped, tag = 'scoped memory for transformer_forward.1']
    #allocation9 [shape = 'u8[1024]{0}', space=vmem, size = 0x400, scoped, tag = 'input window, operand 6']
    #allocation10 [shape = 'u8[1024]{0}', space=vmem, size = 0x400, scoped, tag = 'input window, operand 7']
    #allocation11 [shape = 's32[2]{0}', space=sflag, size = 0x8, scoped, tag = 'scoped memory for transformer_forward.1']
    #allocation12 [shape = 'u8[1024]{0}', space=vmem, size = 0x400, scoped, tag = 'input window, operand 9']
    #allocation13 [shape = 'u8[1024]{0}', space=vmem, size = 0x400, scoped, tag = 'input window, operand 11']
    #allocation14 [shape = 's32[2]{0}', space=sflag, size = 0x8, scoped, tag = 'scoped memory for transformer_forward.1']
    #allocation15 [shape = 'u8[8192]{0}', space=vmem, size = 0x2000, scoped, tag = 'output window, operand 0, single buffered']
    %17 = vsyncpa [#allocation5], 0
    %18 = vsyncpa [#allocation8], 0
    %s19 = scalar_lea.sflag [#allocation8], 1
    %20 = vsyncpa %s19, 0
    %21 = vsyncpa [#allocation11], 0
    %s22 = scalar_lea.sflag [#allocation11], 1
    %23 = vsyncpa %s22, 0
    %24 = vsyncpa [#allocation14], 0
    %s25 = scalar_lea.sflag [#allocation14], 1
    %26 = vsyncpa %s25, 0
    %27 = vsyncpa [#allocation6], 0
    loop: start=0, step=1, limit=4
    $region2: #{transformer_forward.1} parent=1 // loop_pre_header
      _
    $region3: #{transformer_forward.1} parent=1 // loop_header
      %s29 = sphi 0, %s33
      %p30 = scmp.ge.s32.totalorder %s29, 4
      %s36 = sphi 0, %s48
      %s37 = sphi 0, %s44
      %s38 = sphi 0, %s36
      %s39 = sphi 0, %s37
      %s40 = sphi 0, %s38
      %s41 = sphi 0, %s39
      %s51 = sphi 0, %s53
      %s54 = sphi 0, %s51
      %s55 = sphi 0, %s54
      %s71 = sphi 0, %s55
      %s77 = sphi 0, %s79
      %s80 = sphi 0, %s77
      %s81 = sphi 0, %s80
      %s97 = sphi 0, %s81
      %s103 = sphi 0, %s105
      %s106 = sphi 0, %s103
      %s107 = sphi 0, %s106
      %s123 = sphi 0, %s107
      %s129 = sphi 0, %s131
      %s132 = sphi 0, %s129
      %s133 = sphi 0, %s132
      %s149 = sphi 0, %s133
      %s155 = sphi 0, %s157
      %s158 = sphi 0, %s155
      %s159 = sphi 0, %s158
      %s175 = sphi 0, %s159
      %s181 = sphi 0, %s183
      %s184 = sphi 0, %s181
      %s185 = sphi 0, %s184
      %s201 = sphi 0, %s185
      %s207 = sphi 0, %s209
      %s210 = sphi 0, %s207
      %s211 = sphi 0, %s210
      %s227 = sphi 0, %s211
      %s233 = sphi 0, %s235
      %s236 = sphi 0, %s233
      %s237 = sphi 0, %s236
      %s253 = sphi 0, %s237
      %s259 = sphi 0, %s261
      %s262 = sphi 0, %s259
      %s263 = sphi 0, %s262
      %s279 = sphi 0, %s263
      %s285 = sphi 0, %s287
      %s288 = sphi 0, %s285
      %s289 = sphi 0, %s288
      %s305 = sphi 0, %s289
      %s311 = sphi 0, %s313
      %s314 = sphi 0, %s311
      %s315 = sphi 0, %s314
      %s331 = sphi 0, %s315
      %s337 = sphi 0, %s339
      %s340 = sphi 0, %s337
      %s341 = sphi 0, %s340
      %s357 = sphi 0, %s341
      %s363 = sphi 0, %s365
      %s366 = sphi 0, %s363
      %s367 = sphi 0, %s366
      %s383 = sphi 0, %s367
    $region4: #{transformer_forward.1} parent=1 // loop_header_branch
      %32 = sbr.rel (%p30) target = $region8
    $region5: #{transformer_forward.1} parent=1 // loop_body
      %s34 = ssub.s32 %s29, 1
      %s35 = ssub.s32 %s29, 2
      %s42 = sadd.s32 1, %s37
      %p43 = scmp.ge.s32.totalorder %s42, 2
      %s44 = scalar_select %p43, 0, %s42
      %s45 = sadd.s32 1, %s36
      %s46 = scalar_select %p43, %s45, %s36
      %p47 = scmp.ge.s32.totalorder %s46, 1
      %s48 = scalar_select %p47, 0, %s46
      %s49 = ssub.s32 %s36, %s48
      %p50 = scmp.eq.s32.totalorder %s49, 0
      %s52 = sadd.s32 %s51, 1
      %s53 = scalar_select %p50, %s51, %s52
      %p56 = pneg %p50
      %p57 = scmp.eq.s32.totalorder %s29, 1
      %p58 = por %p56, %p57
      %p59 = scmp.ne.s32.totalorder %s51, %s54
      %p60 = scmp.eq.s32.totalorder %s29, 0
      %p61 = por %p59, %p60
      %p62 = scmp.ne.s32.totalorder %s51, %s54
      %p63 = scmp.eq.s32.totalorder %s34, 1
      %p64 = por %p62, %p63
      %p65 = scmp.ne.s32.totalorder %s54, %s55
      %p66 = scmp.eq.s32.totalorder %s34, 0
      %p67 = por %p65, %p66
      %p68 = scmp.ne.s32.totalorder %s54, %s55
      %p69 = scmp.eq.s32.totalorder %s35, 1
      %p70 = por %p68, %p69
      %p72 = scmp.ne.s32.totalorder %s55, %s71
      %p73 = scmp.eq.s32.totalorder %s35, 0
      %p74 = por %p72, %p73
      %s75 = ssub.s32 %s37, %s44
      %p76 = scmp.eq.s32.totalorder %s75, 0
      %s78 = sadd.s32 %s77, 1
      %s79 = scalar_select %p76, %s77, %s78
      %p82 = pneg %p76
      %p83 = scmp.eq.s32.totalorder %s29, 1
      %p84 = por %p82, %p83
      %p85 = scmp.ne.s32.totalorder %s77, %s80
      %p86 = scmp.eq.s32.totalorder %s29, 0
      %p87 = por %p85, %p86
      %p88 = scmp.ne.s32.totalorder %s77, %s80
      %p89 = scmp.eq.s32.totalorder %s34, 1
      %p90 = por %p88, %p89
      %p91 = scmp.ne.s32.totalorder %s80, %s81
      %p92 = scmp.eq.s32.totalorder %s34, 0
      %p93 = por %p91, %p92
      %p94 = scmp.ne.s32.totalorder %s80, %s81
      %p95 = scmp.eq.s32.totalorder %s35, 1
      %p96 = por %p94, %p95
      %p98 = scmp.ne.s32.totalorder %s81, %s97
      %p99 = scmp.eq.s32.totalorder %s35, 0
      %p100 = por %p98, %p99
      %s101 = ssub.s32 %s37, %s44
      %p102 = scmp.eq.s32.totalorder %s101, 0
      %s104 = sadd.s32 %s103, 1
      %s105 = scalar_select %p102, %s103, %s104
      %p108 = pneg %p102
      %p109 = scmp.eq.s32.totalorder %s29, 1
      %p110 = por %p108, %p109
      %p111 = scmp.ne.s32.totalorder %s103, %s106
      %p112 = scmp.eq.s32.totalorder %s29, 0
      %p113 = por %p111, %p112
      %p114 = scmp.ne.s32.totalorder %s103, %s106
      %p115 = scmp.eq.s32.totalorder %s34, 1
      %p116 = por %p114, %p115
      %p117 = scmp.ne.s32.totalorder %s106, %s107
      %p118 = scmp.eq.s32.totalorder %s34, 0
      %p119 = por %p117, %p118
      %p120 = scmp.ne.s32.totalorder %s106, %s107
      %p121 = scmp.eq.s32.totalorder %s35, 1
      %p122 = por %p120, %p121
      %p124 = scmp.ne.s32.totalorder %s107, %s123
      %p125 = scmp.eq.s32.totalorder %s35, 0
      %p126 = por %p124, %p125
      %s127 = ssub.s32 %s37, %s44
      %p128 = scmp.eq.s32.totalorder %s127, 0
      %s130 = sadd.s32 %s129, 1
      %s131 = scalar_select %p128, %s129, %s130
      %p134 = pneg %p128
      %p135 = scmp.eq.s32.totalorder %s29, 1
      %p136 = por %p134, %p135
      %p137 = scmp.ne.s32.totalorder %s129, %s132
      %p138 = scmp.eq.s32.totalorder %s29, 0
      %p139 = por %p137, %p138
      %p140 = scmp.ne.s32.totalorder %s129, %s132
      %p141 = scmp.eq.s32.totalorder %s34, 1
      %p142 = por %p140, %p141
      %p143 = scmp.ne.s32.totalorder %s132, %s133
      %p144 = scmp.eq.s32.totalorder %s34, 0
      %p145 = por %p143, %p144
      %p146 = scmp.ne.s32.totalorder %s132, %s133
      %p147 = scmp.eq.s32.totalorder %s35, 1
      %p148 = por %p146, %p147
      %p150 = scmp.ne.s32.totalorder %s133, %s149
      %p151 = scmp.eq.s32.totalorder %s35, 0
      %p152 = por %p150, %p151
      %s153 = ssub.s32 %s37, %s44
      %p154 = scmp.eq.s32.totalorder %s153, 0
      %s156 = sadd.s32 %s155, 1
      %s157 = scalar_select %p154, %s155, %s156
      %p160 = pneg %p154
      %p161 = scmp.eq.s32.totalorder %s29, 1
      %p162 = por %p160, %p161
      %p163 = scmp.ne.s32.totalorder %s155, %s158
      %p164 = scmp.eq.s32.totalorder %s29, 0
      %p165 = por %p163, %p164
      %p166 = scmp.ne.s32.totalorder %s155, %s158
      %p167 = scmp.eq.s32.totalorder %s34, 1
      %p168 = por %p166, %p167
      %p169 = scmp.ne.s32.totalorder %s158, %s159
      %p170 = scmp.eq.s32.totalorder %s34, 0
      %p171 = por %p169, %p170
      %p172 = scmp.ne.s32.totalorder %s158, %s159
      %p173 = scmp.eq.s32.totalorder %s35, 1
      %p174 = por %p172, %p173
      %p176 = scmp.ne.s32.totalorder %s159, %s175
      %p177 = scmp.eq.s32.totalorder %s35, 0
      %p178 = por %p176, %p177
      %s179 = ssub.s32 %s37, %s44
      %p180 = scmp.eq.s32.totalorder %s179, 0
      %s182 = sadd.s32 %s181, 1
      %s183 = scalar_select %p180, %s181, %s182
      %p186 = pneg %p180
      %p187 = scmp.eq.s32.totalorder %s29, 1
      %p188 = por %p186, %p187
      %p189 = scmp.ne.s32.totalorder %s181, %s184
      %p190 = scmp.eq.s32.totalorder %s29, 0
      %p191 = por %p189, %p190
      %p192 = scmp.ne.s32.totalorder %s181, %s184
      %p193 = scmp.eq.s32.totalorder %s34, 1
      %p194 = por %p192, %p193
      %p195 = scmp.ne.s32.totalorder %s184, %s185
      %p196 = scmp.eq.s32.totalorder %s34, 0
      %p197 = por %p195, %p196
      %p198 = scmp.ne.s32.totalorder %s184, %s185
      %p199 = scmp.eq.s32.totalorder %s35, 1
      %p200 = por %p198, %p199
      %p202 = scmp.ne.s32.totalorder %s185, %s201
      %p203 = scmp.eq.s32.totalorder %s35, 0
      %p204 = por %p202, %p203
      %s205 = ssub.s32 %s37, %s44
      %p206 = scmp.eq.s32.totalorder %s205, 0
      %s208 = sadd.s32 %s207, 1
      %s209 = scalar_select %p206, %s207, %s208
      %p212 = pneg %p206
      %p213 = scmp.eq.s32.totalorder %s29, 1
      %p214 = por %p212, %p213
      %p215 = scmp.ne.s32.totalorder %s207, %s210
      %p216 = scmp.eq.s32.totalorder %s29, 0
      %p217 = por %p215, %p216
      %p218 = scmp.ne.s32.totalorder %s207, %s210
      %p219 = scmp.eq.s32.totalorder %s34, 1
      %p220 = por %p218, %p219
      %p221 = scmp.ne.s32.totalorder %s210, %s211
      %p222 = scmp.eq.s32.totalorder %s34, 0
      %p223 = por %p221, %p222
      %p224 = scmp.ne.s32.totalorder %s210, %s211
      %p225 = scmp.eq.s32.totalorder %s35, 1
      %p226 = por %p224, %p225
      %p228 = scmp.ne.s32.totalorder %s211, %s227
      %p229 = scmp.eq.s32.totalorder %s35, 0
      %p230 = por %p228, %p229
      %s231 = ssub.s32 %s37, %s44
      %p232 = scmp.eq.s32.totalorder %s231, 0
      %s234 = sadd.s32 %s233, 1
      %s235 = scalar_select %p232, %s233, %s234
      %p238 = pneg %p232
      %p239 = scmp.eq.s32.totalorder %s29, 1
      %p240 = por %p238, %p239
      %p241 = scmp.ne.s32.totalorder %s233, %s236
      %p242 = scmp.eq.s32.totalorder %s29, 0
      %p243 = por %p241, %p242
      %p244 = scmp.ne.s32.totalorder %s233, %s236
      %p245 = scmp.eq.s32.totalorder %s34, 1
      %p246 = por %p244, %p245
      %p247 = scmp.ne.s32.totalorder %s236, %s237
      %p248 = scmp.eq.s32.totalorder %s34, 0
      %p249 = por %p247, %p248
      %p250 = scmp.ne.s32.totalorder %s236, %s237
      %p251 = scmp.eq.s32.totalorder %s35, 1
      %p252 = por %p250, %p251
      %p254 = scmp.ne.s32.totalorder %s237, %s253
      %p255 = scmp.eq.s32.totalorder %s35, 0
      %p256 = por %p254, %p255
      %s257 = ssub.s32 %s37, %s44
      %p258 = scmp.eq.s32.totalorder %s257, 0
      %s260 = sadd.s32 %s259, 1
      %s261 = scalar_select %p258, %s259, %s260
      %p264 = pneg %p258
      %p265 = scmp.eq.s32.totalorder %s29, 1
      %p266 = por %p264, %p265
      %p267 = scmp.ne.s32.totalorder %s259, %s262
      %p268 = scmp.eq.s32.totalorder %s29, 0
      %p269 = por %p267, %p268
      %p270 = scmp.ne.s32.totalorder %s259, %s262
      %p271 = scmp.eq.s32.totalorder %s34, 1
      %p272 = por %p270, %p271
      %p273 = scmp.ne.s32.totalorder %s262, %s263
      %p274 = scmp.eq.s32.totalorder %s34, 0
      %p275 = por %p273, %p274
      %p276 = scmp.ne.s32.totalorder %s262, %s263
      %p277 = scmp.eq.s32.totalorder %s35, 1
      %p278 = por %p276, %p277
      %p280 = scmp.ne.s32.totalorder %s263, %s279
      %p281 = scmp.eq.s32.totalorder %s35, 0
      %p282 = por %p280, %p281
      %s283 = ssub.s32 %s37, %s44
      %p284 = scmp.eq.s32.totalorder %s283, 0
      %s286 = sadd.s32 %s285, 1
      %s287 = scalar_select %p284, %s285, %s286
      %p290 = pneg %p284
      %p291 = scmp.eq.s32.totalorder %s29, 1
      %p292 = por %p290, %p291
      %p293 = scmp.ne.s32.totalorder %s285, %s288
      %p294 = scmp.eq.s32.totalorder %s29, 0
      %p295 = por %p293, %p294
      %p296 = scmp.ne.s32.totalorder %s285, %s288
      %p297 = scmp.eq.s32.totalorder %s34, 1
      %p298 = por %p296, %p297
      %p299 = scmp.ne.s32.totalorder %s288, %s289
      %p300 = scmp.eq.s32.totalorder %s34, 0
      %p301 = por %p299, %p300
      %p302 = scmp.ne.s32.totalorder %s288, %s289
      %p303 = scmp.eq.s32.totalorder %s35, 1
      %p304 = por %p302, %p303
      %p306 = scmp.ne.s32.totalorder %s289, %s305
      %p307 = scmp.eq.s32.totalorder %s35, 0
      %p308 = por %p306, %p307
      %s309 = ssub.s32 %s37, %s44
      %p310 = scmp.eq.s32.totalorder %s309, 0
      %s312 = sadd.s32 %s311, 1
      %s313 = scalar_select %p310, %s311, %s312
      %p316 = pneg %p310
      %p317 = scmp.eq.s32.totalorder %s29, 1
      %p318 = por %p316, %p317
      %p319 = scmp.ne.s32.totalorder %s311, %s314
      %p320 = scmp.eq.s32.totalorder %s29, 0
      %p321 = por %p319, %p320
      %p322 = scmp.ne.s32.totalorder %s311, %s314
      %p323 = scmp.eq.s32.totalorder %s34, 1
      %p324 = por %p322, %p323
      %p325 = scmp.ne.s32.totalorder %s314, %s315
      %p326 = scmp.eq.s32.totalorder %s34, 0
      %p327 = por %p325, %p326
      %p328 = scmp.ne.s32.totalorder %s314, %s315
      %p329 = scmp.eq.s32.totalorder %s35, 1
      %p330 = por %p328, %p329
      %p332 = scmp.ne.s32.totalorder %s315, %s331
      %p333 = scmp.eq.s32.totalorder %s35, 0
      %p334 = por %p332, %p333
      %s335 = ssub.s32 %s37, %s44
      %p336 = scmp.eq.s32.totalorder %s335, 0
      %s338 = sadd.s32 %s337, 1
      %s339 = scalar_select %p336, %s337, %s338
      %p342 = pneg %p336
      %p343 = scmp.eq.s32.totalorder %s29, 1
      %p344 = por %p342, %p343
      %p345 = scmp.ne.s32.totalorder %s337, %s340
      %p346 = scmp.eq.s32.totalorder %s29, 0
      %p347 = por %p345, %p346
      %p348 = scmp.ne.s32.totalorder %s337, %s340
      %p349 = scmp.eq.s32.totalorder %s34, 1
      %p350 = por %p348, %p349
      %p351 = scmp.ne.s32.totalorder %s340, %s341
      %p352 = scmp.eq.s32.totalorder %s34, 0
      %p353 = por %p351, %p352
      %p354 = scmp.ne.s32.totalorder %s340, %s341
      %p355 = scmp.eq.s32.totalorder %s35, 1
      %p356 = por %p354, %p355
      %p358 = scmp.ne.s32.totalorder %s341, %s357
      %p359 = scmp.eq.s32.totalorder %s35, 0
      %p360 = por %p358, %p359
      %s361 = ssub.s32 %s36, %s48
      %p362 = scmp.eq.s32.totalorder %s361, 0
      %s364 = sadd.s32 %s363, 1
      %s365 = scalar_select %p362, %s363, %s364
      %p368 = pneg %p362
      %p369 = scmp.eq.s32.totalorder %s29, 1
      %p370 = por %p368, %p369
      %p371 = scmp.ne.s32.totalorder %s363, %s366
      %p372 = scmp.eq.s32.totalorder %s29, 0
      %p373 = por %p371, %p372
      %p374 = scmp.ne.s32.totalorder %s363, %s366
      %p375 = scmp.eq.s32.totalorder %s34, 1
      %p376 = por %p374, %p375
      %p377 = scmp.ne.s32.totalorder %s366, %s367
      %p378 = scmp.eq.s32.totalorder %s34, 0
      %p379 = por %p377, %p378
      %p380 = scmp.ne.s32.totalorder %s366, %s367
      %p381 = scmp.eq.s32.totalorder %s35, 1
      %p382 = por %p380, %p381
      %p384 = scmp.ne.s32.totalorder %s367, %s383
      %p385 = scmp.eq.s32.totalorder %s35, 0
      %p386 = por %p384, %p385
      %p387 = scmp.le.s32.totalorder 1, %s29
      %p388 = scmp.lt.s32.totalorder %s29, 3
      %p389 = pnand %p387, %p388
      %p390 = pneg %p389
      // Predicated region
      $region9: #{transformer_forward.1} parent=5 // pred_check
        _
      $region10: #{transformer_forward.1} parent=5 // pred_check_branch
        %392 = sbr.rel (%p389) target = $region12
      $region11: #{transformer_forward.1} parent=5 // pred_region
        %s393 = ssub.s32 %s29, 1
        // Predicated region
        $region13: #{transformer_forward.1} parent=11 // pred_check
          %p394 = pneg %p67
        $region14: #{transformer_forward.1} parent=11 // pred_check_branch
          %396 = sbr.rel (%p394) target = $region16
        $region15: #{transformer_forward.1} parent=11 // pred_region
          %s397 = smul.u32 2, %s38
          %s399 = ssub.s32 256, 256
          %400 = vsyncadd [#allocation5], %s399
          %s401 = smul.addr %s397, 128
          %s402 = scalar_lea.hbm %s0, %s401
          %s403 = sshll.u32 [#allocation4], 4
          %s404 = int_to_ptr.vmem [resolvable:$true] %s403
          %409 = dma.hbm_to_vmem [thread:$0]  %s402, 256, %s404, [#allocation5], 128, 128, 8
        $region16: #{transformer_forward.1} parent=11 // pred_fallthru
          _
      $region12: #{transformer_forward.1} parent=5 // pred_fallthru
        _
      %p410 = scmp.lt.s32.totalorder %s29, 2
      // Predicated region
      $region17: #{transformer_forward.1} parent=5 // pred_check
        %p411 = pneg %p410
      $region18: #{transformer_forward.1} parent=5 // pred_check_branch
        %413 = sbr.rel (%p411) target = $region20
      $region19: #{transformer_forward.1} parent=5 // pred_region
        // Predicated region
        $region21: #{transformer_forward.1} parent=19 // pred_check
          %p414 = pneg %p87
        $region22: #{transformer_forward.1} parent=19 // pred_check_branch
          %416 = sbr.rel (%p414) target = $region24
        $region23: #{transformer_forward.1} parent=19 // pred_region
          %p417 = scmp.lt.s32.totalorder %s37, 1
          %s418 = scalar_select %p417, %s37, 1
          %s419 = scalar_lea.vmem %s1, %s418
        $region24: #{transformer_forward.1} parent=19 // pred_fallthru
          _
        // Predicated region
        $region25: #{transformer_forward.1} parent=19 // pred_check
          %p420 = pneg %p113
        $region26: #{transformer_forward.1} parent=19 // pred_check_branch
          %422 = sbr.rel (%p420) target = $region28
        $region27: #{transformer_forward.1} parent=19 // pred_region
          %p423 = scmp.lt.s32.totalorder %s37, 1
          %s424 = scalar_select %p423, %s37, 1
          %s425 = scalar_lea.vmem %s2, %s424
        $region28: #{transformer_forward.1} parent=19 // pred_fallthru
          _
        // Predicated region
        $region29: #{transformer_forward.1} parent=19 // pred_check
          %p426 = pneg %p139
        $region30: #{transformer_forward.1} parent=19 // pred_check_branch
          %428 = sbr.rel (%p426) target = $region32
        $region31: #{transformer_forward.1} parent=19 // pred_region
          %p429 = scmp.lt.s32.totalorder %s37, 1
          %s430 = scalar_select %p429, %s37, 1
          %s431 = smul.addr %s430, 4
          %s432 = smul.addr %s431, 4
          %s433 = scalar_lea.vmem %s3, %s432
        $region32: #{transformer_forward.1} parent=19 // pred_fallthru
          _
        // Predicated region
        $region33: #{transformer_forward.1} parent=19 // pred_check
          %p434 = pneg %p165
        $region34: #{transformer_forward.1} parent=19 // pred_check_branch
          %436 = sbr.rel (%p434) target = $region36
        $region35: #{transformer_forward.1} parent=19 // pred_region
          %p437 = scmp.lt.s32.totalorder %s37, 1
          %s438 = scalar_select %p437, %s37, 1
          %s439 = smul.addr %s438, 4
          %s440 = smul.addr %s439, 4
          %s441 = scalar_lea.vmem %s4, %s440
        $region36: #{transformer_forward.1} parent=19 // pred_fallthru
          _
        // Predicated region
        $region37: #{transformer_forward.1} parent=19 // pred_check
          %p442 = pneg %p191
        $region38: #{transformer_forward.1} parent=19 // pred_check_branch
          %444 = sbr.rel (%p442) target = $region40
        $region39: #{transformer_forward.1} parent=19 // pred_region
          %s445 = sand.u32 %s29, 1
          %s446 = scalar_lea.sflag [#allocation8], %s445
          %s447 = sand.u32 %s181, 1
          %s448 = scalar_lea.vmem [#allocation7], %s447
          %s450 = ssub.s32 16, 16
          %451 = vsyncadd %s446, %s450
          %s452 = smul.addr %s37, 16
          %s453 = scalar_lea.hbm %s5, %s452
          %s455 = sshll.u32 %s448, 4
          %s456 = int_to_ptr.vmem [resolvable:$true] %s455
          %458 = dma.hbm_to_vmem [thread:$0]  %s453, 16, %s456, %s446
        $region40: #{transformer_forward.1} parent=19 // pred_fallthru
          _
        // Predicated region
        $region41: #{transformer_forward.1} parent=19 // pred_check
          %p459 = pneg %p217
        $region42: #{transformer_forward.1} parent=19 // pred_check_branch
          %461 = sbr.rel (%p459) target = $region44
        $region43: #{transformer_forward.1} parent=19 // pred_region
          %s462 = sand.u32 %s29, 1
          %s463 = scalar_lea.sflag [#allocation8], %s462
          %s464 = sand.u32 %s207, 1
          %s465 = scalar_lea.vmem [#allocation9], %s464
          %s467 = ssub.s32 16, 16
          %468 = vsyncadd %s463, %s467
          %s469 = smul.addr %s37, 16
          %s470 = scalar_lea.hbm %s6, %s469
          %s472 = sshll.u32 %s465, 4
          %s473 = int_to_ptr.vmem [resolvable:$true] %s472
          %475 = dma.hbm_to_vmem [thread:$0]  %s470, 16, %s473, %s463
        $region44: #{transformer_forward.1} parent=19 // pred_fallthru
          _
        // Predicated region
        $region45: #{transformer_forward.1} parent=19 // pred_check
          %p476 = pneg %p243
        $region46: #{transformer_forward.1} parent=19 // pred_check_branch
          %478 = sbr.rel (%p476) target = $region48
        $region47: #{transformer_forward.1} parent=19 // pred_region
          %s479 = sand.u32 %s29, 1
          %s480 = scalar_lea.sflag [#allocation11], %s479
          %s481 = sand.u32 %s233, 1
          %s482 = scalar_lea.vmem [#allocation10], %s481
          %s484 = ssub.s32 16, 16
          %485 = vsyncadd %s480, %s484
          %s486 = smul.addr %s37, 16
          %s487 = scalar_lea.hbm %s7, %s486
          %s489 = sshll.u32 %s482, 4
          %s490 = int_to_ptr.vmem [resolvable:$true] %s489
          %492 = dma.hbm_to_vmem [thread:$0]  %s487, 16, %s490, %s480
        $region48: #{transformer_forward.1} parent=19 // pred_fallthru
          _
        // Predicated region
        $region49: #{transformer_forward.1} parent=19 // pred_check
          %p493 = pneg %p269
        $region50: #{transformer_forward.1} parent=19 // pred_check_branch
          %495 = sbr.rel (%p493) target = $region52
        $region51: #{transformer_forward.1} parent=19 // pred_region
          %p496 = scmp.lt.s32.totalorder %s37, 1
          %s497 = scalar_select %p496, %s37, 1
          %s498 = smul.addr %s497, 4
          %s499 = smul.addr %s498, 4
          %s500 = scalar_lea.vmem %s8, %s499
        $region52: #{transformer_forward.1} parent=19 // pred_fallthru
          _
        // Predicated region
        $region53: #{transformer_forward.1} parent=19 // pred_check
          %p501 = pneg %p295
        $region54: #{transformer_forward.1} parent=19 // pred_check_branch
          %503 = sbr.rel (%p501) target = $region56
        $region55: #{transformer_forward.1} parent=19 // pred_region
          %s504 = sand.u32 %s29, 1
          %s505 = scalar_lea.sflag [#allocation11], %s504
          %s506 = sand.u32 %s285, 1
          %s507 = scalar_lea.vmem [#allocation12], %s506
          %s509 = ssub.s32 16, 16
          %510 = vsyncadd %s505, %s509
          %s511 = smul.addr %s37, 16
          %s512 = scalar_lea.hbm %s9, %s511
          %s514 = sshll.u32 %s507, 4
          %s515 = int_to_ptr.vmem [resolvable:$true] %s514
          %517 = dma.hbm_to_vmem [thread:$0]  %s512, 16, %s515, %s505
        $region56: #{transformer_forward.1} parent=19 // pred_fallthru
          _
        // Predicated region
        $region57: #{transformer_forward.1} parent=19 // pred_check
          %p518 = pneg %p321
        $region58: #{transformer_forward.1} parent=19 // pred_check_branch
          %520 = sbr.rel (%p518) target = $region60
        $region59: #{transformer_forward.1} parent=19 // pred_region
          %p521 = scmp.lt.s32.totalorder %s37, 1
          %s522 = scalar_select %p521, %s37, 1
          %s523 = smul.addr %s522, 8
          %s524 = smul.addr %s523, 4
          %s525 = scalar_lea.vmem %s10, %s524
        $region60: #{transformer_forward.1} parent=19 // pred_fallthru
          _
        // Predicated region
        $region61: #{transformer_forward.1} parent=19 // pred_check
          %p526 = pneg %p347
        $region62: #{transformer_forward.1} parent=19 // pred_check_branch
          %528 = sbr.rel (%p526) target = $region64
        $region63: #{transformer_forward.1} parent=19 // pred_region
          %s529 = sand.u32 %s337, 1
          %s530 = scalar_lea.sflag [#allocation14], %s529
          %s531 = sand.u32 %s337, 1
          %s532 = scalar_lea.vmem [#allocation13], %s531
          %s534 = ssub.s32 16, 16
          %535 = vsyncadd %s530, %s534
          %s536 = smul.addr %s37, 16
          %s537 = scalar_lea.hbm %s11, %s536
          %s539 = sshll.u32 %s532, 4
          %s540 = int_to_ptr.vmem [resolvable:$true] %s539
          %542 = dma.hbm_to_vmem [thread:$0]  %s537, 16, %s540, %s530
        $region64: #{transformer_forward.1} parent=19 // pred_fallthru
          _
      $region20: #{transformer_forward.1} parent=5 // pred_fallthru
        _
      %p543 = scmp.le.s32.totalorder 1, %s29
      %p544 = scmp.lt.s32.totalorder %s29, 3
      %p545 = pnand %p543, %p544
      %p546 = pneg %p545
      // Predicated region
      $region65: #{transformer_forward.1} parent=5 // pred_check
        _
      $region66: #{transformer_forward.1} parent=5 // pred_check_branch
        %548 = sbr.rel (%p545) target = $region68
      $region67: #{transformer_forward.1} parent=5 // pred_region
        %s549 = ssub.s32 %s29, 1
        // Predicated region
        $region69: #{transformer_forward.1} parent=67 // pred_check
          %p550 = pneg %p67
        $region70: #{transformer_forward.1} parent=67 // pred_check_branch
          %552 = sbr.rel (%p550) target = $region72
        $region71: #{transformer_forward.1} parent=67 // pred_region
          %553 = dma.done [#allocation5], 256
        $region72: #{transformer_forward.1} parent=67 // pred_fallthru
          _
        %s554 = sand.u32 %s34, 1
        %s555 = scalar_lea.sflag [#allocation8], %s554
        %s556 = sand.u32 %s184, 1
        %s557 = scalar_lea.vmem [#allocation7], %s556
        // Predicated region
        $region73: #{transformer_forward.1} parent=67 // pred_check
          %p558 = pneg %p197
        $region74: #{transformer_forward.1} parent=67 // pred_check_branch
          %560 = sbr.rel (%p558) target = $region76
        $region75: #{transformer_forward.1} parent=67 // pred_region
          %561 = dma.done %s555, 16
        $region76: #{transformer_forward.1} parent=67 // pred_fallthru
          _
        %s562 = sand.u32 %s34, 1
        %s563 = scalar_lea.sflag [#allocation8], %s562
        %s564 = sand.u32 %s210, 1
        %s565 = scalar_lea.vmem [#allocation9], %s564
        // Predicated region
        $region77: #{transformer_forward.1} parent=67 // pred_check
          %p566 = pneg %p223
        $region78: #{transformer_forward.1} parent=67 // pred_check_branch
          %568 = sbr.rel (%p566) target = $region80
        $region79: #{transformer_forward.1} parent=67 // pred_region
          %569 = dma.done %s563, 16
        $region80: #{transformer_forward.1} parent=67 // pred_fallthru
          _
        %s570 = sand.u32 %s34, 1
        %s571 = scalar_lea.sflag [#allocation11], %s570
        %s572 = sand.u32 %s236, 1
        %s573 = scalar_lea.vmem [#allocation10], %s572
        // Predicated region
        $region81: #{transformer_forward.1} parent=67 // pred_check
          %p574 = pneg %p249
        $region82: #{transformer_forward.1} parent=67 // pred_check_branch
          %576 = sbr.rel (%p574) target = $region84
        $region83: #{transformer_forward.1} parent=67 // pred_region
          %577 = dma.done %s571, 16
        $region84: #{transformer_forward.1} parent=67 // pred_fallthru
          _
        %s578 = sand.u32 %s34, 1
        %s579 = scalar_lea.sflag [#allocation11], %s578
        %s580 = sand.u32 %s288, 1
        %s581 = scalar_lea.vmem [#allocation12], %s580
        // Predicated region
        $region85: #{transformer_forward.1} parent=67 // pred_check
          %p582 = pneg %p301
        $region86: #{transformer_forward.1} parent=67 // pred_check_branch
          %584 = sbr.rel (%p582) target = $region88
        $region87: #{transformer_forward.1} parent=67 // pred_region
          %585 = dma.done %s579, 16
        $region88: #{transformer_forward.1} parent=67 // pred_fallthru
          _
        %s586 = sand.u32 %s340, 1
        %s587 = scalar_lea.sflag [#allocation14], %s586
        %s588 = sand.u32 %s340, 1
        %s589 = scalar_lea.vmem [#allocation13], %s588
        // Predicated region
        $region89: #{transformer_forward.1} parent=67 // pred_check
          %p590 = pneg %p353
        $region90: #{transformer_forward.1} parent=67 // pred_check_branch
          %592 = sbr.rel (%p590) target = $region92
        $region91: #{transformer_forward.1} parent=67 // pred_region
          %593 = dma.done %s587, 16
        $region92: #{transformer_forward.1} parent=67 // pred_fallthru
          _
        %p594 = pneg %p67
        %p595 = pneg %p64
        %p596 = scmp.lt.s32.totalorder %s39, 1
        %s597 = scalar_select %p596, %s39, 1
        %s598 = scalar_lea.vmem %s1, %s597
        %p599 = pneg %p93
        %p600 = pneg %p90
        %p601 = scmp.lt.s32.totalorder %s39, 1
        %s602 = scalar_select %p601, %s39, 1
        %s603 = scalar_lea.vmem %s2, %s602
        %p604 = pneg %p119
        %p605 = pneg %p116
        %p606 = scmp.lt.s32.totalorder %s39, 1
        %s607 = scalar_select %p606, %s39, 1
        %s608 = smul.addr %s607, 4
        %s609 = smul.addr %s608, 4
        %s610 = scalar_lea.vmem %s3, %s609
        %p611 = pneg %p145
        %p612 = pneg %p142
        %p613 = scmp.lt.s32.totalorder %s39, 1
        %s614 = scalar_select %p613, %s39, 1
        %s615 = smul.addr %s614, 4
        %s616 = smul.addr %s615, 4
        %s617 = scalar_lea.vmem %s4, %s616
        %p618 = pneg %p171
        %p619 = pneg %p168
        %s620 = sand.u32 %s34, 1
        %s621 = scalar_lea.sflag [#allocation8], %s620
        %s622 = sand.u32 %s184, 1
        %s623 = scalar_lea.vmem [#allocation7], %s622
        %p624 = pneg %p197
        %p625 = pneg %p194
        %s626 = sand.u32 %s34, 1
        %s627 = scalar_lea.sflag [#allocation8], %s626
        %s628 = sand.u32 %s210, 1
        %s629 = scalar_lea.vmem [#allocation9], %s628
        %p630 = pneg %p223
        %p631 = pneg %p220
        %s632 = sand.u32 %s34, 1
        %s633 = scalar_lea.sflag [#allocation11], %s632
        %s634 = sand.u32 %s236, 1
        %s635 = scalar_lea.vmem [#allocation10], %s634
        %p636 = pneg %p249
        %p637 = pneg %p246
        %p638 = scmp.lt.s32.totalorder %s39, 1
        %s639 = scalar_select %p638, %s39, 1
        %s640 = smul.addr %s639, 4
        %s641 = smul.addr %s640, 4
        %s642 = scalar_lea.vmem %s8, %s641
        %p643 = pneg %p275
        %p644 = pneg %p272
        %s645 = sand.u32 %s34, 1
        %s646 = scalar_lea.sflag [#allocation11], %s645
        %s647 = sand.u32 %s288, 1
        %s648 = scalar_lea.vmem [#allocation12], %s647
        %p649 = pneg %p301
        %p650 = pneg %p298
        %p651 = scmp.lt.s32.totalorder %s39, 1
        %s652 = scalar_select %p651, %s39, 1
        %s653 = smul.addr %s652, 8
        %s654 = smul.addr %s653, 4
        %s655 = scalar_lea.vmem %s10, %s654
        %p656 = pneg %p327
        %p657 = pneg %p324
        %s658 = sand.u32 %s340, 1
        %s659 = scalar_lea.sflag [#allocation14], %s658
        %s660 = sand.u32 %s340, 1
        %s661 = scalar_lea.vmem [#allocation13], %s660
        %p662 = pneg %p353
        %p663 = pneg %p350
        %p664 = pneg %p379
        %p665 = pneg %p376
        %s666 = smul.u32 2, %s38
        %p667 = scmp.lt.s32.totalorder %s39, 1
        %s668 = scalar_select %p667, %s39, 1
        %s669 = scalar_lea.vmem %s1, %s668
        %p670 = scmp.lt.s32.totalorder %s39, 1
        %s671 = scalar_select %p670, %s39, 1
        %s672 = scalar_lea.vmem %s2, %s671
        %p673 = scmp.lt.s32.totalorder %s39, 1
        %s674 = scalar_select %p673, %s39, 1
        %s675 = smul.addr %s674, 4
        %s676 = smul.addr %s675, 4
        %s677 = scalar_lea.vmem %s3, %s676
        %p678 = scmp.lt.s32.totalorder %s39, 1
        %s679 = scalar_select %p678, %s39, 1
        %s680 = smul.addr %s679, 4
        %s681 = smul.addr %s680, 4
        %s682 = scalar_lea.vmem %s4, %s681
        %p683 = scmp.lt.s32.totalorder %s39, 1
        %s684 = scalar_select %p683, %s39, 1
        %s685 = smul.addr %s684, 4
        %s686 = smul.addr %s685, 4
        %s687 = scalar_lea.vmem %s8, %s686
        %p688 = scmp.lt.s32.totalorder %s39, 1
        %s689 = scalar_select %p688, %s39, 1
        %s690 = smul.addr %s689, 8
        %s691 = smul.addr %s690, 4
        %s692 = scalar_lea.vmem %s10, %s691
        %s693 = smul.u32 2, %s38
        %p695 = scmp.eq.s32.totalorder %s39, 0
        // Predicated region
        $region93: #{transformer_forward.1} parent=67 // pred_check
          %p696 = pneg %p695
        $region94: #{transformer_forward.1} parent=67 // pred_check_branch
          %698 = sbr.rel (%p696) target = $region96
        $region95: #{transformer_forward.1} parent=67 // pred_region
          %v699 = vld [vmem:[#allocation4] sm:$0xff]
          %v700 = vld [vmem:[#allocation4 + $0x8] sm:$0xff]
          %vm701 = vcmask 261120
          %702 = vst.msk [vmem:[#allocation2] sm:$0xff] %vm701, %v699
          %703 = vst.msk [vmem:[#allocation2 + $0x8] sm:$0xff] %vm701, %v700
        $region96: #{transformer_forward.1} parent=67 // pred_fallthru
          _
        %v704 = vld [vmem:[#allocation2] sm:$0xff]
        %v705 = vld [vmem:[#allocation2 + $0x8] sm:$0xff]
        %v706 = vld [vmem:[%s669] sm:$0x1]
        %v707 = vld [vmem:[%s672] sm:$0x1]
        %vm708 = vcmask 261120
        %v709 = vsel %vm708, %v704, 0.0
        %710 = vadd.xlane.f32.xlu0 %v709
        %v711 = vpop.xlane.xlu0 %710
        %v712 = vsel %vm708, %v705, 0.0
        %713 = vadd.xlane.f32.xlu0 %v712
        %v714 = vpop.xlane.xlu0 %713
        %v715 = vrcp.pop 32.0
        %v716 = vmul.f32 %v711, %v715
        %v717 = vmul.f32 %v714, %v715
        %v718 = vsub.f32 %v704, %v716
        %v719 = vsub.f32 %v705, %v717
        %v720 = vmul.f32 %v718, %v718
        %v721 = vmul.f32 %v719, %v719
        %v722 = vsel %vm708, %v720, 0.0
        %723 = vadd.xlane.f32.xlu0 %v722
        %v724 = vpop.xlane.xlu0 %723
        %v725 = vsel %vm708, %v721, 0.0
        %726 = vadd.xlane.f32.xlu0 %v725
        %v727 = vpop.xlane.xlu0 %726
        %v728 = vmul.f32 %v724, %v715
        %v729 = vmul.f32 %v727, %v715
        %v730 = vadd.f32 %v728, 1e-05
        %v731 = vadd.f32 %v729, 1e-05
        %v732 = vrsqrt.pop %v730
        %v733 = vrsqrt.pop %v731
        %v734 = vmul.f32 %v718, %v732
        %v735 = vmul.f32 %v719, %v733
        %v737 = vlaneseq
        %v738 = vshrl.u32 %v737, 7
        %v739 = vsub.s32 0, %v738
        %v740 = vrot.slane %v706, %v739
        %v742 = vmul.f32 %v734, %v740
        %v743 = vmul.f32 %v735, %v740
        %v745 = vlaneseq
        %v746 = vshrl.u32 %v745, 7
        %v747 = vsub.s32 0, %v746
        %v748 = vrot.slane %v707, %v747
        %v750 = vadd.f32 %v742, %v748
        %v751 = vadd.f32 %v743, %v748
        %v752 = vpack.c.bf16 %v751, %v750
        %v753 = vld [vmem:[%s677] sm:$0xf]
        %v754 = vld [vmem:[%s677 + $0x4] sm:$0xf]
        %v755 = vld [vmem:[%s677 + $0x8] sm:$0xf]
        %v756 = vld [vmem:[%s677 + $0xc] sm:$0xf]
        %v761 = vunpack.c.l.b16 %v753
        %v762 = vunpack.c.l.b16 %v754
        %v763 = vunpack.c.l.b16 %v755
        %v764 = vunpack.c.l.b16 %v756
        %v765 = vpack.c.b16 %v762, %v761
        %v766 = vpack.c.b16 %v764, %v763
        %v770 = vsel %vm708, %v752, 0
        %772 = vmatprep.subr.bf16.mxu0 0
        %773 = vmatpush1.bf16.msra.mxu0 %v765
        %774 = vmatprep.subr.bf16.mxu0 0
        %775 = vmatpush1.bf16.msra.mxu0 %v766
        %776 = vmatprep.subr.bf16.mxu0 0
        %777 = vmatpush1.bf16.msra.mxu0 0
        %778 = vmatprep.subr.bf16.mxu0 0
        %779 = vmatpush1.bf16.msra.mxu0 0
        %780 = vmatprep.subr.bf16.mxu0 0
        %781 = vmatpush1.bf16.msra.mxu0 0
        %782 = vmatprep.subr.bf16.mxu0 0
        %783 = vmatpush1.bf16.msra.mxu0 0
        %784 = vmatprep.subr.bf16.mxu0 0
        %785 = vmatpush1.bf16.msra.mxu0 0
        %786 = vmatprep.subr.bf16.mxu0 0
        %787 = vmatpush1.bf16.msra.mxu0 0
        %788 = vmatprep.subr.bf16.mxu0 0
        %789 = vmatpush1.bf16.msra.mxu0 0
        %790 = vmatprep.subr.bf16.mxu0 0
        %791 = vmatpush1.bf16.msra.mxu0 0
        %792 = vmatprep.subr.bf16.mxu0 0
        %793 = vmatpush1.bf16.msra.mxu0 0
        %794 = vmatprep.subr.bf16.mxu0 0
        %795 = vmatpush1.bf16.msra.mxu0 0
        %796 = vmatprep.subr.bf16.mxu0 0
        %797 = vmatpush1.bf16.msra.mxu0 0
        %798 = vmatprep.subr.bf16.mxu0 0
        %799 = vmatpush1.bf16.msra.mxu0 0
        %800 = vmatprep.subr.bf16.mxu0 0
        %801 = vmatpush1.bf16.msra.mxu0 0
        %802 = vmatprep.subr.bf16.mxu0 0
        %803 = vmatpush1.bf16.msra.mxu0 0
        %804 = vmatprep.mubr.bf16.mxu0 0
        %805 = vmatmul.mubr.bf16.gmra.mrb[0].mxu0 %v770
        %v806 = vpop.f32.mrb[0].mxu0
        %v807 = vadd.f32 0.0, %v806
        %v808 = vpop.f32.mrb[0].mxu0
        %v809 = vpop.f32.mrb[0].mxu0
        %v810 = vadd.f32 0.0, %v809
        %v811 = vpop.f32.mrb[0].mxu0
        %812 = vdwg.mxu0
        %v813 = vpack.c.bf16 %v810, %v807
        %v815 = vunpack.c.l.b16 %v813
        %v816 = vunpack.c.h.b16 %v813
        %v817 = vpack.c.b16 %v815, %v815
        %v818 = vpack.c.b16 %v816, %v816
        %819 = vrot.lane.b32.xlu0 %v817, 96
        %v820 = vpop.permute.xlu0 %819
        %vm821 = vcmask 64512
        %v823 = vsel %vm821, %v817, 0
        %v826 = vsel %vm821, %v820, 0
        %828 = vmatprep.subr.bf16.mxu0 0
        %829 = vmatpush1.bf16.xpose.msra.mxu0 %v826
        %830 = vmatprep.subr.bf16.mxu0 0
        %831 = vmatpush1.bf16.xpose.msra.mxu0 0
        %832 = vmatprep.subr.bf16.mxu0 0
        %833 = vmatpush1.bf16.xpose.msra.mxu0 0
        %834 = vmatprep.subr.bf16.mxu0 0
        %835 = vmatpush1.bf16.xpose.msra.mxu0 0
        %836 = vmatprep.subr.bf16.mxu0 0
        %837 = vmatpush1.bf16.xpose.msra.mxu0 0
        %838 = vmatprep.subr.bf16.mxu0 0
        %839 = vmatpush1.bf16.xpose.msra.mxu0 0
        %840 = vmatprep.subr.bf16.mxu0 0
        %841 = vmatpush1.bf16.xpose.msra.mxu0 0
        %842 = vmatprep.subr.bf16.mxu0 0
        %843 = vmatpush1.bf16.xpose.msra.mxu0 0
        %844 = vmatprep.subr.bf16.mxu0 0
        %845 = vmatpush1.bf16.xpose.msra.mxu0 0
        %846 = vmatprep.subr.bf16.mxu0 0
        %847 = vmatpush1.bf16.xpose.msra.mxu0 0
        %848 = vmatprep.subr.bf16.mxu0 0
        %849 = vmatpush1.bf16.xpose.msra.mxu0 0
        %850 = vmatprep.subr.bf16.mxu0 0
        %851 = vmatpush1.bf16.xpose.msra.mxu0 0
        %852 = vmatprep.subr.bf16.mxu0 0
        %853 = vmatpush1.bf16.xpose.msra.mxu0 0
        %854 = vmatprep.subr.bf16.mxu0 0
        %855 = vmatpush1.bf16.xpose.msra.mxu0 0
        %856 = vmatprep.subr.bf16.mxu0 0
        %857 = vmatpush1.bf16.xpose.msra.mxu0 0
        %858 = vmatprep.subr.bf16.mxu0 0
        %859 = vmatpush1.bf16.xpose.msra.mxu0 0
        %860 = vmatprep.mubr.bf16.mxu0 0
        %861 = vmatmul.mubr.bf16.gmra.mrb[0].mxu0 %v823
        %v862 = vpop.f32.mrb[0].mxu0
        %v863 = vadd.f32 0.0, %v862
        %v864 = vpop.f32.mrb[0].mxu0
        %v865 = vpop.f32.mrb[0].mxu0
        %v866 = vpop.f32.mrb[0].mxu0
        %867 = vdwg.mxu0
        %868 = vrot.lane.b32.xlu0 %v818, 96
        %v869 = vpop.permute.xlu0 %868
        %v871 = vsel %vm821, %v818, 0
        %v874 = vsel %vm821, %v869, 0
        %876 = vmatprep.subr.bf16.mxu0 0
        %877 = vmatpush1.bf16.xpose.msra.mxu0 %v874
        %878 = vmatprep.subr.bf16.mxu0 0
        %879 = vmatpush1.bf16.xpose.msra.mxu0 0
        %880 = vmatprep.subr.bf16.mxu0 0
        %881 = vmatpush1.bf16.xpose.msra.mxu0 0
        %882 = vmatprep.subr.bf16.mxu0 0
        %883 = vmatpush1.bf16.xpose.msra.mxu0 0
        %884 = vmatprep.subr.bf16.mxu0 0
        %885 = vmatpush1.bf16.xpose.msra.mxu0 0
        %886 = vmatprep.subr.bf16.mxu0 0
        %887 = vmatpush1.bf16.xpose.msra.mxu0 0
        %888 = vmatprep.subr.bf16.mxu0 0
        %889 = vmatpush1.bf16.xpose.msra.mxu0 0
        %890 = vmatprep.subr.bf16.mxu0 0
        %891 = vmatpush1.bf16.xpose.msra.mxu0 0
        %892 = vmatprep.subr.bf16.mxu0 0
        %893 = vmatpush1.bf16.xpose.msra.mxu0 0
        %894 = vmatprep.subr.bf16.mxu0 0
        %895 = vmatpush1.bf16.xpose.msra.mxu0 0
        %896 = vmatprep.subr.bf16.mxu0 0
        %897 = vmatpush1.bf16.xpose.msra.mxu0 0
        %898 = vmatprep.subr.bf16.mxu0 0
        %899 = vmatpush1.bf16.xpose.msra.mxu0 0
        %900 = vmatprep.subr.bf16.mxu0 0
        %901 = vmatpush1.bf16.xpose.msra.mxu0 0
        %902 = vmatprep.subr.bf16.mxu0 0
        %903 = vmatpush1.bf16.xpose.msra.mxu0 0
        %904 = vmatprep.subr.bf16.mxu0 0
        %905 = vmatpush1.bf16.xpose.msra.mxu0 0
        %906 = vmatprep.subr.bf16.mxu0 0
        %907 = vmatpush1.bf16.xpose.msra.mxu0 0
        %908 = vmatprep.mubr.bf16.mxu0 0
        %909 = vmatmul.mubr.bf16.gmra.mrb[0].mxu0 %v871
        %v910 = vpop.f32.mrb[0].mxu0
        %v911 = vadd.f32 0.0, %v910
        %v912 = vpop.f32.mrb[0].mxu0
        %v913 = vpop.f32.mrb[0].mxu0
        %v914 = vpop.f32.mrb[0].mxu0
        %915 = vdwg.mxu0
        %v916 = vsel %vm821, %v863, -inf
        %917 = vmax.xlane.f32.xlu0 %v916
        %v918 = vpop.xlane.xlu0 %917
        %v919 = vsel %vm821, %v911, -inf
        %920 = vmax.xlane.f32.xlu0 %v919
        %v921 = vpop.xlane.xlu0 %920
        %v922 = vsub.f32 %v863, %v918
        %v923 = vsub.f32 %v911, %v921
        %v924 = vmul.f32 %v922, 1.442695
        %v925 = vpow.pop %v924
        %v926 = vmul.f32 %v923, 1.442695
        %v927 = vpow.pop %v926
        %v928 = vsel %vm821, %v925, 0.0
        %929 = vadd.xlane.f32.xlu0 %v928
        %v930 = vpop.xlane.xlu0 %929
        %v931 = vsel %vm821, %v927, 0.0
        %932 = vadd.xlane.f32.xlu0 %v931
        %v933 = vpop.xlane.xlu0 %932
        %v934 = vrcp.pop %v930
        %v935 = vrcp.pop %v933
        %v936 = vmul.f32 %v925, %v934
        %v937 = vmul.f32 %v927, %v935
        %v938 = vpack.c.bf16 %v936, %v936
        %v939 = vpack.c.bf16 %v937, %v937
        %940 = vrot.lane.b32.xlu0 %v817, 64
        %v941 = vpop.permute.xlu0 %940
        %v943 = vsel %vm821, %v938, 0
        %vm945 = vcmask 1043456
        %v947 = vsel %vm945, %v941, 0
        %949 = vmatprep.subr.bf16.mxu0 0
        %950 = vmatpush1.bf16.msra.mxu0 %v947
        %951 = vmatprep.subr.bf16.mxu0 0
        %952 = vmatpush1.bf16.msra.mxu0 0
        %953 = vmatprep.subr.bf16.mxu0 0
        %954 = vmatpush1.bf16.msra.mxu0 0
        %955 = vmatprep.subr.bf16.mxu0 0
        %956 = vmatpush1.bf16.msra.mxu0 0
        %957 = vmatprep.subr.bf16.mxu0 0
        %958 = vmatpush1.bf16.msra.mxu0 0
        %959 = vmatprep.subr.bf16.mxu0 0
        %960 = vmatpush1.bf16.msra.mxu0 0
        %961 = vmatprep.subr.bf16.mxu0 0
        %962 = vmatpush1.bf16.msra.mxu0 0
        %963 = vmatprep.subr.bf16.mxu0 0
        %964 = vmatpush1.bf16.msra.mxu0 0
        %965 = vmatprep.subr.bf16.mxu0 0
        %966 = vmatpush1.bf16.msra.mxu0 0
        %967 = vmatprep.subr.bf16.mxu0 0
        %968 = vmatpush1.bf16.msra.mxu0 0
        %969 = vmatprep.subr.bf16.mxu0 0
        %970 = vmatpush1.bf16.msra.mxu0 0
        %971 = vmatprep.subr.bf16.mxu0 0
        %972 = vmatpush1.bf16.msra.mxu0 0
        %973 = vmatprep.subr.bf16.mxu0 0
        %974 = vmatpush1.bf16.msra.mxu0 0
        %975 = vmatprep.subr.bf16.mxu0 0
        %976 = vmatpush1.bf16.msra.mxu0 0
        %977 = vmatprep.subr.bf16.mxu0 0
        %978 = vmatpush1.bf16.msra.mxu0 0
        %979 = vmatprep.subr.bf16.mxu0 0
        %980 = vmatpush1.bf16.msra.mxu0 0
        %981 = vmatprep.mubr.bf16.mxu0 0
        %982 = vmatmul.mubr.bf16.gmra.mrb[0].mxu0 %v943
        %v983 = vpop.f32.mrb[0].mxu0
        %v984 = vadd.f32 0.0, %v983
        %v985 = vpop.f32.mrb[0].mxu0
        %v986 = vpop.f32.mrb[0].mxu0
        %v987 = vpop.f32.mrb[0].mxu0
        %988 = vdwg.mxu0
        %989 = vrot.lane.b32.xlu0 %v818, 64
        %v990 = vpop.permute.xlu0 %989
        %v992 = vsel %vm821, %v939, 0
        %v995 = vsel %vm945, %v990, 0
        %997 = vmatprep.subr.bf16.mxu0 0
        %998 = vmatpush1.bf16.msra.mxu0 %v995
        %999 = vmatprep.subr.bf16.mxu0 0
        %1000 = vmatpush1.bf16.msra.mxu0 0
        %1001 = vmatprep.subr.bf16.mxu0 0
        %1002 = vmatpush1.bf16.msra.mxu0 0
        %1003 = vmatprep.subr.bf16.mxu0 0
        %1004 = vmatpush1.bf16.msra.mxu0 0
        %1005 = vmatprep.subr.bf16.mxu0 0
        %1006 = vmatpush1.bf16.msra.mxu0 0
        %1007 = vmatprep.subr.bf16.mxu0 0
        %1008 = vmatpush1.bf16.msra.mxu0 0
        %1009 = vmatprep.subr.bf16.mxu0 0
        %1010 = vmatpush1.bf16.msra.mxu0 0
        %1011 = vmatprep.subr.bf16.mxu0 0
        %1012 = vmatpush1.bf16.msra.mxu0 0
        %1013 = vmatprep.subr.bf16.mxu0 0
        %1014 = vmatpush1.bf16.msra.mxu0 0
        %1015 = vmatprep.subr.bf16.mxu0 0
        %1016 = vmatpush1.bf16.msra.mxu0 0
        %1017 = vmatprep.subr.bf16.mxu0 0
        %1018 = vmatpush1.bf16.msra.mxu0 0
        %1019 = vmatprep.subr.bf16.mxu0 0
        %1020 = vmatpush1.bf16.msra.mxu0 0
        %1021 = vmatprep.subr.bf16.mxu0 0
        %1022 = vmatpush1.bf16.msra.mxu0 0
        %1023 = vmatprep.subr.bf16.mxu0 0
        %1024 = vmatpush1.bf16.msra.mxu0 0
        %1025 = vmatprep.subr.bf16.mxu0 0
        %1026 = vmatpush1.bf16.msra.mxu0 0
        %1027 = vmatprep.subr.bf16.mxu0 0
        %1028 = vmatpush1.bf16.msra.mxu0 0
        %1029 = vmatprep.mubr.bf16.mxu0 0
        %1030 = vmatmul.mubr.bf16.gmra.mrb[0].mxu0 %v992
        %v1031 = vpop.f32.mrb[0].mxu0
        %v1032 = vadd.f32 0.0, %v1031
        %v1033 = vpop.f32.mrb[0].mxu0
        %v1034 = vpop.f32.mrb[0].mxu0
        %v1035 = vpop.f32.mrb[0].mxu0
        %1036 = vdwg.mxu0
        %v1037 = vpack.c.bf16 %v1032, %v984
        %1038 = vst.msk [vmem:[#allocation3] sm:$0xff] %vm821, %v1037
        %1039 = vrot.lane.b32.xlu0 %v817, 120
        %v1040 = vpop.permute.xlu0 %1039
        %1041 = vrot.lane.b32.xlu0 %v817, 88
        %v1042 = vpop.permute.xlu0 %1041
        %v1044 = vsel %vm821, %v1040, 0
        %v1047 = vsel %vm821, %v1042, 0
        %1049 = vmatprep.subr.bf16.mxu0 0
        %1050 = vmatpush1.bf16.xpose.msra.mxu0 %v1047
        %1051 = vmatprep.subr.bf16.mxu0 0
        %1052 = vmatpush1.bf16.xpose.msra.mxu0 0
        %1053 = vmatprep.subr.bf16.mxu0 0
        %1054 = vmatpush1.bf16.xpose.msra.mxu0 0
        %1055 = vmatprep.subr.bf16.mxu0 0
        %1056 = vmatpush1.bf16.xpose.msra.mxu0 0
        %1057 = vmatprep.subr.bf16.mxu0 0
        %1058 = vmatpush1.bf16.xpose.msra.mxu0 0
        %1059 = vmatprep.subr.bf16.mxu0 0
        %1060 = vmatpush1.bf16.xpose.msra.mxu0 0
        %1061 = vmatprep.subr.bf16.mxu0 0
        %1062 = vmatpush1.bf16.xpose.msra.mxu0 0
        %1063 = vmatprep.subr.bf16.mxu0 0
        %1064 = vmatpush1.bf16.xpose.msra.mxu0 0
        %1065 = vmatprep.subr.bf16.mxu0 0
        %1066 = vmatpush1.bf16.xpose.msra.mxu0 0
        %1067 = vmatprep.subr.bf16.mxu0 0
        %1068 = vmatpush1.bf16.xpose.msra.mxu0 0
        %1069 = vmatprep.subr.bf16.mxu0 0
        %1070 = vmatpush1.bf16.xpose.msra.mxu0 0
        %1071 = vmatprep.subr.bf16.mxu0 0
        %1072 = vmatpush1.bf16.xpose.msra.mxu0 0
        %1073 = vmatprep.subr.bf16.mxu0 0
        %1074 = vmatpush1.bf16.xpose.msra.mxu0 0
        %1075 = vmatprep.subr.bf16.mxu0 0
        %1076 = vmatpush1.bf16.xpose.msra.mxu0 0
        %1077 = vmatprep.subr.bf16.mxu0 0
        %1078 = vmatpush1.bf16.xpose.msra.mxu0 0
        %1079 = vmatprep.subr.bf16.mxu0 0
        %1080 = vmatpush1.bf16.xpose.msra.mxu0 0
        %1081 = vmatprep.mubr.bf16.mxu0 0
        %1082 = vmatmul.mubr.bf16.gmra.mrb[0].mxu0 %v1044
        %v1083 = vpop.f32.mrb[0].mxu0
        %v1084 = vadd.f32 0.0, %v1083
        %v1085 = vpop.f32.mrb[0].mxu0
        %v1086 = vpop.f32.mrb[0].mxu0
        %v1087 = vpop.f32.mrb[0].mxu0
        %1088 = vdwg.mxu0
        %1089 = vrot.lane.b32.xlu0 %v818, 120
        %v1090 = vpop.permute.xlu0 %1089
        %1091 = vrot.lane.b32.xlu0 %v818, 88
        %v1092 = vpop.permute.xlu0 %1091
        %v1094 = vsel %vm821, %v1090, 0
        %v1097 = vsel %vm821, %v1092, 0
        %1099 = vmatprep.subr.bf16.mxu0 0
        %1100 = vmatpush1.bf16.xpose.msra.mxu0 %v1097
        %1101 = vmatprep.subr.bf16.mxu0 0
        %1102 = vmatpush1.bf16.xpose.msra.mxu0 0
        %1103 = vmatprep.subr.bf16.mxu0 0
        %1104 = vmatpush1.bf16.xpose.msra.mxu0 0
        %1105 = vmatprep.subr.bf16.mxu0 0
        %1106 = vmatpush1.bf16.xpose.msra.mxu0 0
        %1107 = vmatprep.subr.bf16.mxu0 0
        %1108 = vmatpush1.bf16.xpose.msra.mxu0 0
        %1109 = vmatprep.subr.bf16.mxu0 0
        %1110 = vmatpush1.bf16.xpose.msra.mxu0 0
        %1111 = vmatprep.subr.bf16.mxu0 0
        %1112 = vmatpush1.bf16.xpose.msra.mxu0 0
        %1113 = vmatprep.subr.bf16.mxu0 0
        %1114 = vmatpush1.bf16.xpose.msra.mxu0 0
        %1115 = vmatprep.subr.bf16.mxu0 0
        %1116 = vmatpush1.bf16.xpose.msra.mxu0 0
        %1117 = vmatprep.subr.bf16.mxu0 0
        %1118 = vmatpush1.bf16.xpose.msra.mxu0 0
        %1119 = vmatprep.subr.bf16.mxu0 0
        %1120 = vmatpush1.bf16.xpose.msra.mxu0 0
        %1121 = vmatprep.subr.bf16.mxu0 0
        %1122 = vmatpush1.bf16.xpose.msra.mxu0 0
        %1123 = vmatprep.subr.bf16.mxu0 0
        %1124 = vmatpush1.bf16.xpose.msra.mxu0 0
        %1125 = vmatprep.subr.bf16.mxu0 0
        %1126 = vmatpush1.bf16.xpose.msra.mxu0 0
        %1127 = vmatprep.subr.bf16.mxu0 0
        %1128 = vmatpush1.bf16.xpose.msra.mxu0 0
        %1129 = vmatprep.subr.bf16.mxu0 0
        %1130 = vmatpush1.bf16.xpose.msra.mxu0 0
        %1131 = vmatprep.mubr.bf16.mxu0 0
        %1132 = vmatmul.mubr.bf16.gmra.mrb[0].mxu0 %v1094
        %v1133 = vpop.f32.mrb[0].mxu0
        %v1134 = vadd.f32 0.0, %v1133
        %v1135 = vpop.f32.mrb[0].mxu0
        %v1136 = vpop.f32.mrb[0].mxu0
        %v1137 = vpop.f32.mrb[0].mxu0
        %1138 = vdwg.mxu0
        %v1139 = vsel %vm821, %v1084, -inf
        %1140 = vmax.xlane.f32.xlu0 %v1139
        %v1141 = vpop.xlane.xlu0 %1140
        %v1142 = vsel %vm821, %v1134, -inf
        %1143 = vmax.xlane.f32.xlu0 %v1142
        %v1144 = vpop.xlane.xlu0 %1143
        %v1145 = vsub.f32 %v1084, %v1141
        %v1146 = vsub.f32 %v1134, %v1144
        %v1147 = vmul.f32 %v1145, 1.442695
        %v1148 = vpow.pop %v1147
        %v1149 = vmul.f32 %v1146, 1.442695
        %v1150 = vpow.pop %v1149
        %v1151 = vsel %vm821, %v1148, 0.0
        %1152 = vadd.xlane.f32.xlu0 %v1151
        %v1153 = vpop.xlane.xlu0 %1152
        %v1154 = vsel %vm821, %v1150, 0.0
        %1155 = vadd.xlane.f32.xlu0 %v1154
        %v1156 = vpop.xlane.xlu0 %1155
        %v1157 = vrcp.pop %v1153
        %v1158 = vrcp.pop %v1156
        %v1159 = vmul.f32 %v1148, %v1157
        %v1160 = vmul.f32 %v1150, %v1158
        %v1161 = vpack.c.bf16 %v1159, %v1159
        %v1162 = vpack.c.bf16 %v1160, %v1160
        %1163 = vrot.lane.b32.xlu0 %v817, 56
        %v1164 = vpop.permute.xlu0 %1163
        %v1166 = vsel %vm821, %v1161, 0
        %v1169 = vsel %vm945, %v1164, 0
        %1171 = vmatprep.subr.bf16.mxu0 0
        %1172 = vmatpush1.bf16.msra.mxu0 %v1169
        %1173 = vmatprep.subr.bf16.mxu0 0
        %1174 = vmatpush1.bf16.msra.mxu0 0
        %1175 = vmatprep.subr.bf16.mxu0 0
        %1176 = vmatpush1.bf16.msra.mxu0 0
        %1177 = vmatprep.subr.bf16.mxu0 0
        %1178 = vmatpush1.bf16.msra.mxu0 0
        %1179 = vmatprep.subr.bf16.mxu0 0
        %1180 = vmatpush1.bf16.msra.mxu0 0
        %1181 = vmatprep.subr.bf16.mxu0 0
        %1182 = vmatpush1.bf16.msra.mxu0 0
        %1183 = vmatprep.subr.bf16.mxu0 0
        %1184 = vmatpush1.bf16.msra.mxu0 0
        %1185 = vmatprep.subr.bf16.mxu0 0
        %1186 = vmatpush1.bf16.msra.mxu0 0
        %1187 = vmatprep.subr.bf16.mxu0 0
        %1188 = vmatpush1.bf16.msra.mxu0 0
        %1189 = vmatprep.subr.bf16.mxu0 0
        %1190 = vmatpush1.bf16.msra.mxu0 0
        %1191 = vmatprep.subr.bf16.mxu0 0
        %1192 = vmatpush1.bf16.msra.mxu0 0
        %1193 = vmatprep.subr.bf16.mxu0 0
        %1194 = vmatpush1.bf16.msra.mxu0 0
        %1195 = vmatprep.subr.bf16.mxu0 0
        %1196 = vmatpush1.bf16.msra.mxu0 0
        %1197 = vmatprep.subr.bf16.mxu0 0
        %1198 = vmatpush1.bf16.msra.mxu0 0
        %1199 = vmatprep.subr.bf16.mxu0 0
        %1200 = vmatpush1.bf16.msra.mxu0 0
        %1201 = vmatprep.subr.bf16.mxu0 0
        %1202 = vmatpush1.bf16.msra.mxu0 0
        %1203 = vmatprep.mubr.bf16.mxu0 0
        %1204 = vmatmul.mubr.bf16.gmra.mrb[0].mxu0 %v1166
        %v1205 = vpop.f32.mrb[0].mxu0
        %v1206 = vadd.f32 0.0, %v1205
        %v1207 = vpop.f32.mrb[0].mxu0
        %v1208 = vpop.f32.mrb[0].mxu0
        %v1209 = vpop.f32.mrb[0].mxu0
        %1210 = vdwg.mxu0
        %1211 = vrot.lane.b32.xlu0 %v818, 56
        %v1212 = vpop.permute.xlu0 %1211
        %v1214 = vsel %vm821, %v1162, 0
        %v1217 = vsel %vm945, %v1212, 0
        %1219 = vmatprep.subr.bf16.mxu0 0
        %1220 = vmatpush1.bf16.msra.mxu0 %v1217
        %1221 = vmatprep.subr.bf16.mxu0 0
        %1222 = vmatpush1.bf16.msra.mxu0 0
        %1223 = vmatprep.subr.bf16.mxu0 0
        %1224 = vmatpush1.bf16.msra.mxu0 0
        %1225 = vmatprep.subr.bf16.mxu0 0
        %1226 = vmatpush1.bf16.msra.mxu0 0
        %1227 = vmatprep.subr.bf16.mxu0 0
        %1228 = vmatpush1.bf16.msra.mxu0 0
        %1229 = vmatprep.subr.bf16.mxu0 0
        %1230 = vmatpush1.bf16.msra.mxu0 0
        %1231 = vmatprep.subr.bf16.mxu0 0
        %1232 = vmatpush1.bf16.msra.mxu0 0
        %1233 = vmatprep.subr.bf16.mxu0 0
        %1234 = vmatpush1.bf16.msra.mxu0 0
        %1235 = vmatprep.subr.bf16.mxu0 0
        %1236 = vmatpush1.bf16.msra.mxu0 0
        %1237 = vmatprep.subr.bf16.mxu0 0
        %1238 = vmatpush1.bf16.msra.mxu0 0
        %1239 = vmatprep.subr.bf16.mxu0 0
        %1240 = vmatpush1.bf16.msra.mxu0 0
        %1241 = vmatprep.subr.bf16.mxu0 0
        %1242 = vmatpush1.bf16.msra.mxu0 0
        %1243 = vmatprep.subr.bf16.mxu0 0
        %1244 = vmatpush1.bf16.msra.mxu0 0
        %1245 = vmatprep.subr.bf16.mxu0 0
        %1246 = vmatpush1.bf16.msra.mxu0 0
        %1247 = vmatprep.subr.bf16.mxu0 0
        %1248 = vmatpush1.bf16.msra.mxu0 0
        %1249 = vmatprep.subr.bf16.mxu0 0
        %1250 = vmatpush1.bf16.msra.mxu0 0
        %1251 = vmatprep.mubr.bf16.mxu0 0
        %1252 = vmatmul.mubr.bf16.gmra.mrb[0].mxu0 %v1214
        %v1253 = vpop.f32.mrb[0].mxu0
        %v1254 = vadd.f32 0.0, %v1253
        %v1255 = vpop.f32.mrb[0].mxu0
        %v1256 = vpop.f32.mrb[0].mxu0
        %v1257 = vpop.f32.mrb[0].mxu0
        %1258 = vdwg.mxu0
        %v1259 = vpack.c.bf16 %v1254, %v1206
        %1261 = vrot.lane.b32.xlu0 %v1259, 8
        %v1262 = vpop.permute.xlu0 %1261
        %vm1264 = vcmask 130112
        %1265 = vst.msk [vmem:[#allocation3] sm:$0xff] %vm1264, %v1262
        %1266 = vrot.lane.b32.xlu0 %v817, 112
        %v1267 = vpop.permute.xlu0 %1266
        %1268 = vrot.lane.b32.xlu0 %v817, 80
        %v1269 = vpop.permute.xlu0 %1268
        %v1271 = vsel %vm821, %v1267, 0
        %v1274 = vsel %vm821, %v1269, 0
        %1276 = vmatprep.subr.bf16.mxu0 0
        %1277 = vmatpush1.bf16.xpose.msra.mxu0 %v1274
        %1278 = vmatprep.subr.bf16.mxu0 0
        %1279 = vmatpush1.bf16.xpose.msra.mxu0 0
        %1280 = vmatprep.subr.bf16.mxu0 0
        %1281 = vmatpush1.bf16.xpose.msra.mxu0 0
        %1282 = vmatprep.subr.bf16.mxu0 0
        %1283 = vmatpush1.bf16.xpose.msra.mxu0 0
        %1284 = vmatprep.subr.bf16.mxu0 0
        %1285 = vmatpush1.bf16.xpose.msra.mxu0 0
        %1286 = vmatprep.subr.bf16.mxu0 0
        %1287 = vmatpush1.bf16.xpose.msra.mxu0 0
        %1288 = vmatprep.subr.bf16.mxu0 0
        %1289 = vmatpush1.bf16.xpose.msra.mxu0 0
        %1290 = vmatprep.subr.bf16.mxu0 0
        %1291 = vmatpush1.bf16.xpose.msra.mxu0 0
        %1292 = vmatprep.subr.bf16.mxu0 0
        %1293 = vmatpush1.bf16.xpose.msra.mxu0 0
        %1294 = vmatprep.subr.bf16.mxu0 0
        %1295 = vmatpush1.bf16.xpose.msra.mxu0 0
        %1296 = vmatprep.subr.bf16.mxu0 0
        %1297 = vmatpush1.bf16.xpose.msra.mxu0 0
        %1298 = vmatprep.subr.bf16.mxu0 0
        %1299 = vmatpush1.bf16.xpose.msra.mxu0 0
        %1300 = vmatprep.subr.bf16.mxu0 0
        %1301 = vmatpush1.bf16.xpose.msra.mxu0 0
        %1302 = vmatprep.subr.bf16.mxu0 0
        %1303 = vmatpush1.bf16.xpose.msra.mxu0 0
        %1304 = vmatprep.subr.bf16.mxu0 0
        %1305 = vmatpush1.bf16.xpose.msra.mxu0 0
        %1306 = vmatprep.subr.bf16.mxu0 0
        %1307 = vmatpush1.bf16.xpose.msra.mxu0 0
        %1308 = vmatprep.mubr.bf16.mxu0 0
        %1309 = vmatmul.mubr.bf16.gmra.mrb[0].mxu0 %v1271
        %v1310 = vpop.f32.mrb[0].mxu0
        %v1311 = vadd.f32 0.0, %v1310
        %v1312 = vpop.f32.mrb[0].mxu0
        %v1313 = vpop.f32.mrb[0].mxu0
        %v1314 = vpop.f32.mrb[0].mxu0
        %1315 = vdwg.mxu0
        %1316 = vrot.lane.b32.xlu0 %v818, 112
        %v1317 = vpop.permute.xlu0 %1316
        %1318 = vrot.lane.b32.xlu0 %v818, 80
        %v1319 = vpop.permute.xlu0 %1318
        %v1321 = vsel %vm821, %v1317, 0
        %v1324 = vsel %vm821, %v1319, 0
        %1326 = vmatprep.subr.bf16.mxu0 0
        %1327 = vmatpush1.bf16.xpose.msra.mxu0 %v1324
        %1328 = vmatprep.subr.bf16.mxu0 0
        %1329 = vmatpush1.bf16.xpose.msra.mxu0 0
        %1330 = vmatprep.subr.bf16.mxu0 0
        %1331 = vmatpush1.bf16.xpose.msra.mxu0 0
        %1332 = vmatprep.subr.bf16.mxu0 0
        %1333 = vmatpush1.bf16.xpose.msra.mxu0 0
        %1334 = vmatprep.subr.bf16.mxu0 0
        %1335 = vmatpush1.bf16.xpose.msra.mxu0 0
        %1336 = vmatprep.subr.bf16.mxu0 0
        %1337 = vmatpush1.bf16.xpose.msra.mxu0 0
        %1338 = vmatprep.subr.bf16.mxu0 0
        %1339 = vmatpush1.bf16.xpose.msra.mxu0 0
        %1340 = vmatprep.subr.bf16.mxu0 0
        %1341 = vmatpush1.bf16.xpose.msra.mxu0 0
        %1342 = vmatprep.subr.bf16.mxu0 0
        %1343 = vmatpush1.bf16.xpose.msra.mxu0 0
        %1344 = vmatprep.subr.bf16.mxu0 0
        %1345 = vmatpush1.bf16.xpose.msra.mxu0 0
        %1346 = vmatprep.subr.bf16.mxu0 0
        %1347 = vmatpush1.bf16.xpose.msra.mxu0 0
        %1348 = vmatprep.subr.bf16.mxu0 0
        %1349 = vmatpush1.bf16.xpose.msra.mxu0 0
        %1350 = vmatprep.subr.bf16.mxu0 0
        %1351 = vmatpush1.bf16.xpose.msra.mxu0 0
        %1352 = vmatprep.subr.bf16.mxu0 0
        %1353 = vmatpush1.bf16.xpose.msra.mxu0 0
        %1354 = vmatprep.subr.bf16.mxu0 0
        %1355 = vmatpush1.bf16.xpose.msra.mxu0 0
        %1356 = vmatprep.subr.bf16.mxu0 0
        %1357 = vmatpush1.bf16.xpose.msra.mxu0 0
        %1358 = vmatprep.mubr.bf16.mxu0 0
        %1359 = vmatmul.mubr.bf16.gmra.mrb[0].mxu0 %v1321
        %v1360 = vpop.f32.mrb[0].mxu0
        %v1361 = vadd.f32 0.0, %v1360
        %v1362 = vpop.f32.mrb[0].mxu0
        %v1363 = vpop.f32.mrb[0].mxu0
        %v1364 = vpop.f32.mrb[0].mxu0
        %1365 = vdwg.mxu0
        %v1366 = vsel %vm821, %v1311, -inf
        %1367 = vmax.xlane.f32.xlu0 %v1366
        %v1368 = vpop.xlane.xlu0 %1367
        %v1369 = vsel %vm821, %v1361, -inf
        %1370 = vmax.xlane.f32.xlu0 %v1369
        %v1371 = vpop.xlane.xlu0 %1370
        %v1372 = vsub.f32 %v1311, %v1368
        %v1373 = vsub.f32 %v1361, %v1371
        %v1374 = vmul.f32 %v1372, 1.442695
        %v1375 = vpow.pop %v1374
        %v1376 = vmul.f32 %v1373, 1.442695
        %v1377 = vpow.pop %v1376
        %v1378 = vsel %vm821, %v1375, 0.0
        %1379 = vadd.xlane.f32.xlu0 %v1378
        %v1380 = vpop.xlane.xlu0 %1379
        %v1381 = vsel %vm821, %v1377, 0.0
        %1382 = vadd.xlane.f32.xlu0 %v1381
        %v1383 = vpop.xlane.xlu0 %1382
        %v1384 = vrcp.pop %v1380
        %v1385 = vrcp.pop %v1383
        %v1386 = vmul.f32 %v1375, %v1384
        %v1387 = vmul.f32 %v1377, %v1385
        %v1388 = vpack.c.bf16 %v1386, %v1386
        %v1389 = vpack.c.bf16 %v1387, %v1387
        %1390 = vrot.lane.b32.xlu0 %v817, 48
        %v1391 = vpop.permute.xlu0 %1390
        %v1393 = vsel %vm821, %v1388, 0
        %v1396 = vsel %vm945, %v1391, 0
        %1398 = vmatprep.subr.bf16.mxu0 0
        %1399 = vmatpush1.bf16.msra.mxu0 %v1396
        %1400 = vmatprep.subr.bf16.mxu0 0
        %1401 = vmatpush1.bf16.msra.mxu0 0
        %1402 = vmatprep.subr.bf16.mxu0 0
        %1403 = vmatpush1.bf16.msra.mxu0 0
        %1404 = vmatprep.subr.bf16.mxu0 0
        %1405 = vmatpush1.bf16.msra.mxu0 0
        %1406 = vmatprep.subr.bf16.mxu0 0
        %1407 = vmatpush1.bf16.msra.mxu0 0
        %1408 = vmatprep.subr.bf16.mxu0 0
        %1409 = vmatpush1.bf16.msra.mxu0 0
        %1410 = vmatprep.subr.bf16.mxu0 0
        %1411 = vmatpush1.bf16.msra.mxu0 0
        %1412 = vmatprep.subr.bf16.mxu0 0
        %1413 = vmatpush1.bf16.msra.mxu0 0
        %1414 = vmatprep.subr.bf16.mxu0 0
        %1415 = vmatpush1.bf16.msra.mxu0 0
        %1416 = vmatprep.subr.bf16.mxu0 0
        %1417 = vmatpush1.bf16.msra.mxu0 0
        %1418 = vmatprep.subr.bf16.mxu0 0
        %1419 = vmatpush1.bf16.msra.mxu0 0
        %1420 = vmatprep.subr.bf16.mxu0 0
        %1421 = vmatpush1.bf16.msra.mxu0 0
        %1422 = vmatprep.subr.bf16.mxu0 0
        %1423 = vmatpush1.bf16.msra.mxu0 0
        %1424 = vmatprep.subr.bf16.mxu0 0
        %1425 = vmatpush1.bf16.msra.mxu0 0
        %1426 = vmatprep.subr.bf16.mxu0 0
        %1427 = vmatpush1.bf16.msra.mxu0 0
        %1428 = vmatprep.subr.bf16.mxu0 0
        %1429 = vmatpush1.bf16.msra.mxu0 0
        %1430 = vmatprep.mubr.bf16.mxu0 0
        %1431 = vmatmul.mubr.bf16.gmra.mrb[0].mxu0 %v1393
        %v1432 = vpop.f32.mrb[0].mxu0
        %v1433 = vadd.f32 0.0, %v1432
        %v1434 = vpop.f32.mrb[0].mxu0
        %v1435 = vpop.f32.mrb[0].mxu0
        %v1436 = vpop.f32.mrb[0].mxu0
        %1437 = vdwg.mxu0
        %1438 = vrot.lane.b32.xlu0 %v818, 48
        %v1439 = vpop.permute.xlu0 %1438
        %v1441 = vsel %vm821, %v1389, 0
        %v1444 = vsel %vm945, %v1439, 0
        %1446 = vmatprep.subr.bf16.mxu0 0
        %1447 = vmatpush1.bf16.msra.mxu0 %v1444
        %1448 = vmatprep.subr.bf16.mxu0 0
        %1449 = vmatpush1.bf16.msra.mxu0 0
        %1450 = vmatprep.subr.bf16.mxu0 0
        %1451 = vmatpush1.bf16.msra.mxu0 0
        %1452 = vmatprep.subr.bf16.mxu0 0
        %1453 = vmatpush1.bf16.msra.mxu0 0
        %1454 = vmatprep.subr.bf16.mxu0 0
        %1455 = vmatpush1.bf16.msra.mxu0 0
        %1456 = vmatprep.subr.bf16.mxu0 0
        %1457 = vmatpush1.bf16.msra.mxu0 0
        %1458 = vmatprep.subr.bf16.mxu0 0
        %1459 = vmatpush1.bf16.msra.mxu0 0
        %1460 = vmatprep.subr.bf16.mxu0 0
        %1461 = vmatpush1.bf16.msra.mxu0 0
        %1462 = vmatprep.subr.bf16.mxu0 0
        %1463 = vmatpush1.bf16.msra.mxu0 0
        %1464 = vmatprep.subr.bf16.mxu0 0
        %1465 = vmatpush1.bf16.msra.mxu0 0
        %1466 = vmatprep.subr.bf16.mxu0 0
        %1467 = vmatpush1.bf16.msra.mxu0 0
        %1468 = vmatprep.subr.bf16.mxu0 0
        %1469 = vmatpush1.bf16.msra.mxu0 0
        %1470 = vmatprep.subr.bf16.mxu0 0
        %1471 = vmatpush1.bf16.msra.mxu0 0
        %1472 = vmatprep.subr.bf16.mxu0 0
        %1473 = vmatpush1.bf16.msra.mxu0 0
        %1474 = vmatprep.subr.bf16.mxu0 0
        %1475 = vmatpush1.bf16.msra.mxu0 0
        %1476 = vmatprep.subr.bf16.mxu0 0
        %1477 = vmatpush1.bf16.msra.mxu0 0
        %1478 = vmatprep.mubr.bf16.mxu0 0
        %1479 = vmatmul.mubr.bf16.gmra.mrb[0].mxu0 %v1441
        %v1480 = vpop.f32.mrb[0].mxu0
        %v1481 = vadd.f32 0.0, %v1480
        %v1482 = vpop.f32.mrb[0].mxu0
        %v1483 = vpop.f32.mrb[0].mxu0
        %v1484 = vpop.f32.mrb[0].mxu0
        %1485 = vdwg.mxu0
        %v1486 = vpack.c.bf16 %v1481, %v1433
        %1488 = vrot.lane.b32.xlu0 %v1486, 16
        %v1489 = vpop.permute.xlu0 %1488
        %vm1491 = vcmask 195712
        %1492 = vst.msk [vmem:[#allocation3] sm:$0xff] %vm1491, %v1489
        %1493 = vrot.lane.b32.xlu0 %v817, 104
        %v1494 = vpop.permute.xlu0 %1493
        %1495 = vrot.lane.b32.xlu0 %v817, 72
        %v1496 = vpop.permute.xlu0 %1495
        %v1498 = vsel %vm821, %v1494, 0
        %v1501 = vsel %vm821, %v1496, 0
        %1503 = vmatprep.subr.bf16.mxu0 0
        %1504 = vmatpush1.bf16.xpose.msra.mxu0 %v1501
        %1505 = vmatprep.subr.bf16.mxu0 0
        %1506 = vmatpush1.bf16.xpose.msra.mxu0 0
        %1507 = vmatprep.subr.bf16.mxu0 0
        %1508 = vmatpush1.bf16.xpose.msra.mxu0 0
        %1509 = vmatprep.subr.bf16.mxu0 0
        %1510 = vmatpush1.bf16.xpose.msra.mxu0 0
        %1511 = vmatprep.subr.bf16.mxu0 0
        %1512 = vmatpush1.bf16.xpose.msra.mxu0 0
        %1513 = vmatprep.subr.bf16.mxu0 0
        %1514 = vmatpush1.bf16.xpose.msra.mxu0 0
        %1515 = vmatprep.subr.bf16.mxu0 0
        %1516 = vmatpush1.bf16.xpose.msra.mxu0 0
        %1517 = vmatprep.subr.bf16.mxu0 0
        %1518 = vmatpush1.bf16.xpose.msra.mxu0 0
        %1519 = vmatprep.subr.bf16.mxu0 0
        %1520 = vmatpush1.bf16.xpose.msra.mxu0 0
        %1521 = vmatprep.subr.bf16.mxu0 0
        %1522 = vmatpush1.bf16.xpose.msra.mxu0 0
        %1523 = vmatprep.subr.bf16.mxu0 0
        %1524 = vmatpush1.bf16.xpose.msra.mxu0 0
        %1525 = vmatprep.subr.bf16.mxu0 0
        %1526 = vmatpush1.bf16.xpose.msra.mxu0 0
        %1527 = vmatprep.subr.bf16.mxu0 0
        %1528 = vmatpush1.bf16.xpose.msra.mxu0 0
        %1529 = vmatprep.subr.bf16.mxu0 0
        %1530 = vmatpush1.bf16.xpose.msra.mxu0 0
        %1531 = vmatprep.subr.bf16.mxu0 0
        %1532 = vmatpush1.bf16.xpose.msra.mxu0 0
        %1533 = vmatprep.subr.bf16.mxu0 0
        %1534 = vmatpush1.bf16.xpose.msra.mxu0 0
        %1535 = vmatprep.mubr.bf16.mxu0 0
        %1536 = vmatmul.mubr.bf16.gmra.mrb[0].mxu0 %v1498
        %v1537 = vpop.f32.mrb[0].mxu0
        %v1538 = vadd.f32 0.0, %v1537
        %v1539 = vpop.f32.mrb[0].mxu0
        %v1540 = vpop.f32.mrb[0].mxu0
        %v1541 = vpop.f32.mrb[0].mxu0
        %1542 = vdwg.mxu0
        %1543 = vrot.lane.b32.xlu0 %v818, 104
        %v1544 = vpop.permute.xlu0 %1543
        %1545 = vrot.lane.b32.xlu0 %v818, 72
        %v1546 = vpop.permute.xlu0 %1545
        %v1548 = vsel %vm821, %v1544, 0
        %v1551 = vsel %vm821, %v1546, 0
        %1553 = vmatprep.subr.bf16.mxu0 0
        %1554 = vmatpush1.bf16.xpose.msra.mxu0 %v1551
        %1555 = vmatprep.subr.bf16.mxu0 0
        %1556 = vmatpush1.bf16.xpose.msra.mxu0 0
        %1557 = vmatprep.subr.bf16.mxu0 0
        %1558 = vmatpush1.bf16.xpose.msra.mxu0 0
        %1559 = vmatprep.subr.bf16.mxu0 0
        %1560 = vmatpush1.bf16.xpose.msra.mxu0 0
        %1561 = vmatprep.subr.bf16.mxu0 0
        %1562 = vmatpush1.bf16.xpose.msra.mxu0 0
        %1563 = vmatprep.subr.bf16.mxu0 0
        %1564 = vmatpush1.bf16.xpose.msra.mxu0 0
        %1565 = vmatprep.subr.bf16.mxu0 0
        %1566 = vmatpush1.bf16.xpose.msra.mxu0 0
        %1567 = vmatprep.subr.bf16.mxu0 0
        %1568 = vmatpush1.bf16.xpose.msra.mxu0 0
        %1569 = vmatprep.subr.bf16.mxu0 0
        %1570 = vmatpush1.bf16.xpose.msra.mxu0 0
        %1571 = vmatprep.subr.bf16.mxu0 0
        %1572 = vmatpush1.bf16.xpose.msra.mxu0 0
        %1573 = vmatprep.subr.bf16.mxu0 0
        %1574 = vmatpush1.bf16.xpose.msra.mxu0 0
        %1575 = vmatprep.subr.bf16.mxu0 0
        %1576 = vmatpush1.bf16.xpose.msra.mxu0 0
        %1577 = vmatprep.subr.bf16.mxu0 0
        %1578 = vmatpush1.bf16.xpose.msra.mxu0 0
        %1579 = vmatprep.subr.bf16.mxu0 0
        %1580 = vmatpush1.bf16.xpose.msra.mxu0 0
        %1581 = vmatprep.subr.bf16.mxu0 0
        %1582 = vmatpush1.bf16.xpose.msra.mxu0 0
        %1583 = vmatprep.subr.bf16.mxu0 0
        %1584 = vmatpush1.bf16.xpose.msra.mxu0 0
        %1585 = vmatprep.mubr.bf16.mxu0 0
        %1586 = vmatmul.mubr.bf16.gmra.mrb[0].mxu0 %v1548
        %v1587 = vpop.f32.mrb[0].mxu0
        %v1588 = vadd.f32 0.0, %v1587
        %v1589 = vpop.f32.mrb[0].mxu0
        %v1590 = vpop.f32.mrb[0].mxu0
        %v1591 = vpop.f32.mrb[0].mxu0
        %1592 = vdwg.mxu0
        %v1593 = vsel %vm821, %v1538, -inf
        %1594 = vmax.xlane.f32.xlu0 %v1593
        %v1595 = vpop.xlane.xlu0 %1594
        %v1596 = vsel %vm821, %v1588, -inf
        %1597 = vmax.xlane.f32.xlu0 %v1596
        %v1598 = vpop.xlane.xlu0 %1597
        %v1599 = vsub.f32 %v1538, %v1595
        %v1600 = vsub.f32 %v1588, %v1598
        %v1601 = vmul.f32 %v1599, 1.442695
        %v1602 = vpow.pop %v1601
        %v1603 = vmul.f32 %v1600, 1.442695
        %v1604 = vpow.pop %v1603
        %v1605 = vsel %vm821, %v1602, 0.0
        %1606 = vadd.xlane.f32.xlu0 %v1605
        %v1607 = vpop.xlane.xlu0 %1606
        %v1608 = vsel %vm821, %v1604, 0.0
        %1609 = vadd.xlane.f32.xlu0 %v1608
        %v1610 = vpop.xlane.xlu0 %1609
        %v1611 = vrcp.pop %v1607
        %v1612 = vrcp.pop %v1610
        %v1613 = vmul.f32 %v1602, %v1611
        %v1614 = vmul.f32 %v1604, %v1612
        %v1615 = vpack.c.bf16 %v1613, %v1613
        %v1616 = vpack.c.bf16 %v1614, %v1614
        %1617 = vrot.lane.b32.xlu0 %v817, 40
        %v1618 = vpop.permute.xlu0 %1617
        %v1620 = vsel %vm821, %v1615, 0
        %v1623 = vsel %vm945, %v1618, 0
        %1625 = vmatprep.subr.bf16.mxu0 0
        %1626 = vmatpush1.bf16.msra.mxu0 %v1623
        %1627 = vmatprep.subr.bf16.mxu0 0
        %1628 = vmatpush1.bf16.msra.mxu0 0
        %1629 = vmatprep.subr.bf16.mxu0 0
        %1630 = vmatpush1.bf16.msra.mxu0 0
        %1631 = vmatprep.subr.bf16.mxu0 0
        %1632 = vmatpush1.bf16.msra.mxu0 0
        %1633 = vmatprep.subr.bf16.mxu0 0
        %1634 = vmatpush1.bf16.msra.mxu0 0
        %1635 = vmatprep.subr.bf16.mxu0 0
        %1636 = vmatpush1.bf16.msra.mxu0 0
        %1637 = vmatprep.subr.bf16.mxu0 0
        %1638 = vmatpush1.bf16.msra.mxu0 0
        %1639 = vmatprep.subr.bf16.mxu0 0
        %1640 = vmatpush1.bf16.msra.mxu0 0
        %1641 = vmatprep.subr.bf16.mxu0 0
        %1642 = vmatpush1.bf16.msra.mxu0 0
        %1643 = vmatprep.subr.bf16.mxu0 0
        %1644 = vmatpush1.bf16.msra.mxu0 0
        %1645 = vmatprep.subr.bf16.mxu0 0
        %1646 = vmatpush1.bf16.msra.mxu0 0
        %1647 = vmatprep.subr.bf16.mxu0 0
        %1648 = vmatpush1.bf16.msra.mxu0 0
        %1649 = vmatprep.subr.bf16.mxu0 0
        %1650 = vmatpush1.bf16.msra.mxu0 0
        %1651 = vmatprep.subr.bf16.mxu0 0
        %1652 = vmatpush1.bf16.msra.mxu0 0
        %1653 = vmatprep.subr.bf16.mxu0 0
        %1654 = vmatpush1.bf16.msra.mxu0 0
        %1655 = vmatprep.subr.bf16.mxu0 0
        %1656 = vmatpush1.bf16.msra.mxu0 0
        %1657 = vmatprep.mubr.bf16.mxu0 0
        %1658 = vmatmul.mubr.bf16.gmra.mrb[0].mxu0 %v1620
        %v1659 = vpop.f32.mrb[0].mxu0
        %v1660 = vadd.f32 0.0, %v1659
        %v1661 = vpop.f32.mrb[0].mxu0
        %v1662 = vpop.f32.mrb[0].mxu0
        %v1663 = vpop.f32.mrb[0].mxu0
        %1664 = vdwg.mxu0
        %1665 = vrot.lane.b32.xlu0 %v818, 40
        %v1666 = vpop.permute.xlu0 %1665
        %v1668 = vsel %vm821, %v1616, 0
        %v1671 = vsel %vm945, %v1666, 0
        %1673 = vmatprep.subr.bf16.mxu0 0
        %1674 = vmatpush1.bf16.msra.mxu0 %v1671
        %1675 = vmatprep.subr.bf16.mxu0 0
        %1676 = vmatpush1.bf16.msra.mxu0 0
        %1677 = vmatprep.subr.bf16.mxu0 0
        %1678 = vmatpush1.bf16.msra.mxu0 0
        %1679 = vmatprep.subr.bf16.mxu0 0
        %1680 = vmatpush1.bf16.msra.mxu0 0
        %1681 = vmatprep.subr.bf16.mxu0 0
        %1682 = vmatpush1.bf16.msra.mxu0 0
        %1683 = vmatprep.subr.bf16.mxu0 0
        %1684 = vmatpush1.bf16.msra.mxu0 0
        %1685 = vmatprep.subr.bf16.mxu0 0
        %1686 = vmatpush1.bf16.msra.mxu0 0
        %1687 = vmatprep.subr.bf16.mxu0 0
        %1688 = vmatpush1.bf16.msra.mxu0 0
        %1689 = vmatprep.subr.bf16.mxu0 0
        %1690 = vmatpush1.bf16.msra.mxu0 0
        %1691 = vmatprep.subr.bf16.mxu0 0
        %1692 = vmatpush1.bf16.msra.mxu0 0
        %1693 = vmatprep.subr.bf16.mxu0 0
        %1694 = vmatpush1.bf16.msra.mxu0 0
        %1695 = vmatprep.subr.bf16.mxu0 0
        %1696 = vmatpush1.bf16.msra.mxu0 0
        %1697 = vmatprep.subr.bf16.mxu0 0
        %1698 = vmatpush1.bf16.msra.mxu0 0
        %1699 = vmatprep.subr.bf16.mxu0 0
        %1700 = vmatpush1.bf16.msra.mxu0 0
        %1701 = vmatprep.subr.bf16.mxu0 0
        %1702 = vmatpush1.bf16.msra.mxu0 0
        %1703 = vmatprep.subr.bf16.mxu0 0
        %1704 = vmatpush1.bf16.msra.mxu0 0
        %1705 = vmatprep.mubr.bf16.mxu0 0
        %1706 = vmatmul.mubr.bf16.gmra.mrb[0].mxu0 %v1668
        %v1707 = vpop.f32.mrb[0].mxu0
        %v1708 = vadd.f32 0.0, %v1707
        %v1709 = vpop.f32.mrb[0].mxu0
        %v1710 = vpop.f32.mrb[0].mxu0
        %v1711 = vpop.f32.mrb[0].mxu0
        %1712 = vdwg.mxu0
        %v1713 = vpack.c.bf16 %v1708, %v1660
        %1715 = vrot.lane.b32.xlu0 %v1713, 24
        %v1716 = vpop.permute.xlu0 %1715
        %vm1718 = vcmask 261312
        %1719 = vst.msk [vmem:[#allocation3] sm:$0xff] %vm1718, %v1716
        %v1720 = vld [vmem:[#allocation3] sm:$0xff]
        %v1721 = vld [vmem:[%s682] sm:$0xf]
        %v1722 = vld [vmem:[%s682 + $0x4] sm:$0xf]
        %v1723 = vld [vmem:[%s682 + $0x8] sm:$0xf]
        %v1724 = vld [vmem:[%s682 + $0xc] sm:$0xf]
        %v1725 = vld [vmem:[%s557] sm:$0x1]
        %v1727 = vlaneseq
        %v1728 = vshrl.u32 %v1727, 7
        %v1729 = vsub.s32 0, %v1728
        %v1730 = vrot.slane %v1725, %v1729
        %v1736 = vunpack.c.l.b16 %v1721
        %v1737 = vunpack.c.l.b16 %v1722
        %v1738 = vunpack.c.l.b16 %v1723
        %v1739 = vunpack.c.l.b16 %v1724
        %v1740 = vpack.c.b16 %v1737, %v1736
        %v1741 = vpack.c.b16 %v1739, %v1738
        %v1745 = vsel %vm708, %v1720, 0
        %1747 = vmatprep.subr.bf16.mxu0 0
        %1748 = vmatpush1.bf16.msra.mxu0 %v1740
        %1749 = vmatprep.subr.bf16.mxu0 0
        %1750 = vmatpush1.bf16.msra.mxu0 %v1741
        %1751 = vmatprep.subr.bf16.mxu0 0
        %1752 = vmatpush1.bf16.msra.mxu0 0
        %1753 = vmatprep.subr.bf16.mxu0 0
        %1754 = vmatpush1.bf16.msra.mxu0 0
        %1755 = vmatprep.subr.bf16.mxu0 0
        %1756 = vmatpush1.bf16.msra.mxu0 0
        %1757 = vmatprep.subr.bf16.mxu0 0
        %1758 = vmatpush1.bf16.msra.mxu0 0
        %1759 = vmatprep.subr.bf16.mxu0 0
        %1760 = vmatpush1.bf16.msra.mxu0 0
        %1761 = vmatprep.subr.bf16.mxu0 0
        %1762 = vmatpush1.bf16.msra.mxu0 0
        %1763 = vmatprep.subr.bf16.mxu0 0
        %1764 = vmatpush1.bf16.msra.mxu0 0
        %1765 = vmatprep.subr.bf16.mxu0 0
        %1766 = vmatpush1.bf16.msra.mxu0 0
        %1767 = vmatprep.subr.bf16.mxu0 0
        %1768 = vmatpush1.bf16.msra.mxu0 0
        %1769 = vmatprep.subr.bf16.mxu0 0
        %1770 = vmatpush1.bf16.msra.mxu0 0
        %1771 = vmatprep.subr.bf16.mxu0 0
        %1772 = vmatpush1.bf16.msra.mxu0 0
        %1773 = vmatprep.subr.bf16.mxu0 0
        %1774 = vmatpush1.bf16.msra.mxu0 0
        %1775 = vmatprep.subr.bf16.mxu0 0
        %1776 = vmatpush1.bf16.msra.mxu0 0
        %1777 = vmatprep.subr.bf16.mxu0 0
        %1778 = vmatpush1.bf16.msra.mxu0 0
        %1779 = vmatprep.mubr.bf16.mxu0 0
        %1780 = vmatmul.mubr.bf16.gmra.mrb[0].mxu0 %v1745
        %v1781 = vpop.f32.mrb[0].mxu0
        %v1782 = vadd.f32 %v1730, %v1781
        %v1783 = vpop.f32.mrb[0].mxu0
        %v1784 = vpop.f32.mrb[0].mxu0
        %v1785 = vadd.f32 %v1730, %v1784
        %v1786 = vpop.f32.mrb[0].mxu0
        %1787 = vdwg.mxu0
        %v1788 = vadd.f32 %v704, %v1782
        %v1789 = vadd.f32 %v705, %v1785
        %v1790 = vld [vmem:[%s565] sm:$0x1]
        %v1791 = vld [vmem:[%s573] sm:$0x1]
        %v1792 = vsel %vm708, %v1788, 0.0
        %1793 = vadd.xlane.f32.xlu0 %v1792
        %v1794 = vpop.xlane.xlu0 %1793
        %v1795 = vsel %vm708, %v1789, 0.0
        %1796 = vadd.xlane.f32.xlu0 %v1795
        %v1797 = vpop.xlane.xlu0 %1796
        %v1798 = vmul.f32 %v1794, %v715
        %v1799 = vmul.f32 %v1797, %v715
        %v1800 = vsub.f32 %v1788, %v1798
        %v1801 = vsub.f32 %v1789, %v1799
        %v1802 = vmul.f32 %v1800, %v1800
        %v1803 = vmul.f32 %v1801, %v1801
        %v1804 = vsel %vm708, %v1802, 0.0
        %1805 = vadd.xlane.f32.xlu0 %v1804
        %v1806 = vpop.xlane.xlu0 %1805
        %v1807 = vsel %vm708, %v1803, 0.0
        %1808 = vadd.xlane.f32.xlu0 %v1807
        %v1809 = vpop.xlane.xlu0 %1808
        %v1810 = vmul.f32 %v1806, %v715
        %v1811 = vmul.f32 %v1809, %v715
        %v1812 = vadd.f32 %v1810, 1e-05
        %v1813 = vadd.f32 %v1811, 1e-05
        %v1814 = vrsqrt.pop %v1812
        %v1815 = vrsqrt.pop %v1813
        %v1816 = vmul.f32 %v1800, %v1814
        %v1817 = vmul.f32 %v1801, %v1815
        %v1819 = vlaneseq
        %v1820 = vshrl.u32 %v1819, 7
        %v1821 = vsub.s32 0, %v1820
        %v1822 = vrot.slane %v1790, %v1821
        %v1824 = vmul.f32 %v1816, %v1822
        %v1825 = vmul.f32 %v1817, %v1822
        %v1827 = vlaneseq
        %v1828 = vshrl.u32 %v1827, 7
        %v1829 = vsub.s32 0, %v1828
        %v1830 = vrot.slane %v1791, %v1829
        %v1832 = vadd.f32 %v1824, %v1830
        %v1833 = vadd.f32 %v1825, %v1830
        %v1834 = vpack.c.bf16 %v1833, %v1832
        %v1835 = vld [vmem:[%s687] sm:$0xf]
        %v1836 = vld [vmem:[%s687 + $0x4] sm:$0xf]
        %v1837 = vld [vmem:[%s687 + $0x8] sm:$0xf]
        %v1838 = vld [vmem:[%s687 + $0xc] sm:$0xf]
        %v1839 = vld [vmem:[%s581] sm:$0x1]
        %v1841 = vlaneseq
        %v1842 = vshrl.u32 %v1841, 7
        %v1843 = vsub.s32 0, %v1842
        %v1844 = vrot.slane %v1839, %v1843
        %v1850 = vunpack.c.l.b16 %v1835
        %v1851 = vunpack.c.l.b16 %v1836
        %v1852 = vunpack.c.l.b16 %v1837
        %v1853 = vunpack.c.l.b16 %v1838
        %v1854 = vpack.c.b16 %v1851, %v1850
        %v1855 = vpack.c.b16 %v1853, %v1852
        %v1859 = vsel %vm708, %v1834, 0
        %1861 = vmatprep.subr.bf16.mxu0 0
        %1862 = vmatpush1.bf16.msra.mxu0 %v1854
        %1863 = vmatprep.subr.bf16.mxu0 0
        %1864 = vmatpush1.bf16.msra.mxu0 %v1855
        %1865 = vmatprep.subr.bf16.mxu0 0
        %1866 = vmatpush1.bf16.msra.mxu0 0
        %1867 = vmatprep.subr.bf16.mxu0 0
        %1868 = vmatpush1.bf16.msra.mxu0 0
        %1869 = vmatprep.subr.bf16.mxu0 0
        %1870 = vmatpush1.bf16.msra.mxu0 0
        %1871 = vmatprep.subr.bf16.mxu0 0
        %1872 = vmatpush1.bf16.msra.mxu0 0
        %1873 = vmatprep.subr.bf16.mxu0 0
        %1874 = vmatpush1.bf16.msra.mxu0 0
        %1875 = vmatprep.subr.bf16.mxu0 0
        %1876 = vmatpush1.bf16.msra.mxu0 0
        %1877 = vmatprep.subr.bf16.mxu0 0
        %1878 = vmatpush1.bf16.msra.mxu0 0
        %1879 = vmatprep.subr.bf16.mxu0 0
        %1880 = vmatpush1.bf16.msra.mxu0 0
        %1881 = vmatprep.subr.bf16.mxu0 0
        %1882 = vmatpush1.bf16.msra.mxu0 0
        %1883 = vmatprep.subr.bf16.mxu0 0
        %1884 = vmatpush1.bf16.msra.mxu0 0
        %1885 = vmatprep.subr.bf16.mxu0 0
        %1886 = vmatpush1.bf16.msra.mxu0 0
        %1887 = vmatprep.subr.bf16.mxu0 0
        %1888 = vmatpush1.bf16.msra.mxu0 0
        %1889 = vmatprep.subr.bf16.mxu0 0
        %1890 = vmatpush1.bf16.msra.mxu0 0
        %1891 = vmatprep.subr.bf16.mxu0 0
        %1892 = vmatpush1.bf16.msra.mxu0 0
        %1893 = vmatprep.mubr.bf16.mxu0 0
        %1894 = vmatmul.mubr.bf16.gmra.mrb[0].mxu0 %v1859
        %v1895 = vpop.f32.mrb[0].mxu0
        %v1896 = vadd.f32 %v1844, %v1895
        %v1897 = vpop.f32.mrb[0].mxu0
        %v1898 = vpop.f32.mrb[0].mxu0
        %v1899 = vadd.f32 %v1844, %v1898
        %v1900 = vpop.f32.mrb[0].mxu0
        %1901 = vdwg.mxu0
        %v1902 = vmul.f32 %v1896, 0.5
        %v1903 = vmul.f32 %v1899, 0.5
        %v1904 = vmul.f32 %v1896, 0.70710677
        %v1905 = vmul.f32 %v1899, 0.70710677
        %v1906 = verf.f32.pop %v1904
        %v1907 = verf.f32.pop %v1905
        %v1908 = vadd.f32 %v1906, 1.0
        %v1909 = vadd.f32 %v1907, 1.0
        %v1910 = vmul.f32 %v1902, %v1908
        %v1911 = vmul.f32 %v1903, %v1909
        %v1912 = vpack.c.bf16 %v1911, %v1910
        %v1913 = vld [vmem:[%s692] sm:$0xf]
        %v1914 = vld [vmem:[%s692 + $0x4] sm:$0xf]
        %v1915 = vld [vmem:[%s692 + $0x8] sm:$0xf]
        %v1916 = vld [vmem:[%s692 + $0xc] sm:$0xf]
        %v1917 = vld [vmem:[%s692 + $0x10] sm:$0xf]
        %v1918 = vld [vmem:[%s692 + $0x14] sm:$0xf]
        %v1919 = vld [vmem:[%s692 + $0x18] sm:$0xf]
        %v1920 = vld [vmem:[%s692 + $0x1c] sm:$0xf]
        %v1921 = vld [vmem:[%s589] sm:$0x1]
        %v1923 = vlaneseq
        %v1924 = vshrl.u32 %v1923, 7
        %v1925 = vsub.s32 0, %v1924
        %v1926 = vrot.slane %v1921, %v1925
        %v1936 = vunpack.c.l.b16 %v1913
        %v1937 = vunpack.c.l.b16 %v1914
        %v1938 = vunpack.c.l.b16 %v1915
        %v1939 = vunpack.c.l.b16 %v1916
        %v1940 = vunpack.c.l.b16 %v1917
        %v1941 = vunpack.c.l.b16 %v1918
        %v1942 = vunpack.c.l.b16 %v1919
        %v1943 = vunpack.c.l.b16 %v1920
        %v1944 = vpack.c.b16 %v1937, %v1936
        %v1945 = vpack.c.b16 %v1939, %v1938
        %v1946 = vpack.c.b16 %v1941, %v1940
        %v1947 = vpack.c.b16 %v1943, %v1942
        %vm1952 = vcmask 523264
        %v1954 = vsel %vm1952, %v1912, 0
        %1956 = vmatprep.subr.bf16.mxu0 0
        %1957 = vmatpush1.bf16.msra.mxu0 %v1944
        %1958 = vmatprep.subr.bf16.mxu0 0
        %1959 = vmatpush1.bf16.msra.mxu0 %v1945
        %1960 = vmatprep.subr.bf16.mxu0 0
        %1961 = vmatpush1.bf16.msra.mxu0 %v1946
        %1962 = vmatprep.subr.bf16.mxu0 0
        %1963 = vmatpush1.bf16.msra.mxu0 %v1947
        %1964 = vmatprep.subr.bf16.mxu0 0
        %1965 = vmatpush1.bf16.msra.mxu0 0
        %1966 = vmatprep.subr.bf16.mxu0 0
        %1967 = vmatpush1.bf16.msra.mxu0 0
        %1968 = vmatprep.subr.bf16.mxu0 0
        %1969 = vmatpush1.bf16.msra.mxu0 0
        %1970 = vmatprep.subr.bf16.mxu0 0
        %1971 = vmatpush1.bf16.msra.mxu0 0
        %1972 = vmatprep.subr.bf16.mxu0 0
        %1973 = vmatpush1.bf16.msra.mxu0 0
        %1974 = vmatprep.subr.bf16.mxu0 0
        %1975 = vmatpush1.bf16.msra.mxu0 0
        %1976 = vmatprep.subr.bf16.mxu0 0
        %1977 = vmatpush1.bf16.msra.mxu0 0
        %1978 = vmatprep.subr.bf16.mxu0 0
        %1979 = vmatpush1.bf16.msra.mxu0 0
        %1980 = vmatprep.subr.bf16.mxu0 0
        %1981 = vmatpush1.bf16.msra.mxu0 0
        %1982 = vmatprep.subr.bf16.mxu0 0
        %1983 = vmatpush1.bf16.msra.mxu0 0
        %1984 = vmatprep.subr.bf16.mxu0 0
        %1985 = vmatpush1.bf16.msra.mxu0 0
        %1986 = vmatprep.subr.bf16.mxu0 0
        %1987 = vmatpush1.bf16.msra.mxu0 0
        %1988 = vmatprep.mubr.bf16.mxu0 0
        %1989 = vmatmul.mubr.bf16.gmra.mrb[0].mxu0 %v1954
        %v1990 = vpop.f32.mrb[0].mxu0
        %v1991 = vadd.f32 %v1926, %v1990
        %v1992 = vpop.f32.mrb[0].mxu0
        %v1993 = vpop.f32.mrb[0].mxu0
        %v1994 = vadd.f32 %v1926, %v1993
        %v1995 = vpop.f32.mrb[0].mxu0
        %1996 = vdwg.mxu0
        %v1997 = vadd.f32 %v1788, %v1991
        %v1998 = vadd.f32 %v1789, %v1994
        %1999 = vst.msk [vmem:[#allocation2] sm:$0xff] %vm708, %v1997
        %2000 = vst.msk [vmem:[#allocation2 + $0x8] sm:$0xff] %vm708, %v1998
        %p2001 = scmp.eq.s32.totalorder %s39, 1
        // Predicated region
        $region97: #{transformer_forward.1} parent=67 // pred_check
          %p2002 = pneg %p2001
        $region98: #{transformer_forward.1} parent=67 // pred_check_branch
          %2004 = sbr.rel (%p2002) target = $region100
        $region99: #{transformer_forward.1} parent=67 // pred_region
          %v2005 = vld [vmem:[#allocation2] sm:$0xff]
          %v2006 = vld [vmem:[#allocation2 + $0x8] sm:$0xff]
          %2007 = vst.msk [vmem:[#allocation15] sm:$0xff] %vm708, %v2005
          %2008 = vst.msk [vmem:[#allocation15 + $0x8] sm:$0xff] %vm708, %v2006
        $region100: #{transformer_forward.1} parent=67 // pred_fallthru
          _
        // Predicated region
        $region101: #{transformer_forward.1} parent=67 // pred_check
          %p2009 = pneg %p376
        $region102: #{transformer_forward.1} parent=67 // pred_check_branch
          %2011 = sbr.rel (%p2009) target = $region104
        $region103: #{transformer_forward.1} parent=67 // pred_region
          %s2012 = smul.u32 2, %s38
          %s2014 = ssub.s32 256, 256
          %2015 = vsyncadd [#allocation6], %s2014
          %s2016 = smul.addr %s2012, 128
          %s2017 = scalar_lea.hbm %s12, %s2016
          %s2018 = sshll.u32 [#allocation15], 4
          %s2019 = int_to_ptr.vmem [resolvable:$true] %s2018
          %2024 = dma.vmem_to_hbm [thread:$0]  %s2019, 256, %s2017, [#allocation6], 128, 128, 8
        $region104: #{transformer_forward.1} parent=67 // pred_fallthru
          _
        // Predicated region
        $region105: #{transformer_forward.1} parent=67 // pred_check
          %p2025 = pneg %p376
        $region106: #{transformer_forward.1} parent=67 // pred_check_branch
          %2027 = sbr.rel (%p2025) target = $region108
        $region107: #{transformer_forward.1} parent=67 // pred_region
          %2028 = dma.done [#allocation6], 256
        $region108: #{transformer_forward.1} parent=67 // pred_fallthru
          _
      $region68: #{transformer_forward.1} parent=5 // pred_fallthru
        _
      %p2029 = scmp.le.s32.totalorder 2, %s29
      // Predicated region
      $region109: #{transformer_forward.1} parent=5 // pred_check
        %p2030 = pneg %p2029
      $region110: #{transformer_forward.1} parent=5 // pred_check_branch
        %2032 = sbr.rel (%p2030) target = $region112
      $region111: #{transformer_forward.1} parent=5 // pred_region
        %s2033 = ssub.s32 %s29, 2
      $region112: #{transformer_forward.1} parent=5 // pred_fallthru
        _
    $region6: #{transformer_forward.1} parent=1 // loop_footer
      %s33 = sadd.s32 1, %s29
    $region7: #{transformer_forward.1} parent=1 // loop_footer_branch
      %28 = sbr.rel target = $region3
    $region8: #{transformer_forward.1} parent=1 // loop_exit
      _
    %2034 = vsyncpa [#allocation5], 1
    %s2035 = scalar_lea.sflag [#allocation5], 1
    %2036 = vsyncpa %s2035, 1
    %2037 = vsyncpa [#allocation8], 1
    %s2038 = scalar_lea.sflag [#allocation8], 1
    %2039 = vsyncpa %s2038, 1
    %2040 = vsyncpa [#allocation11], 1
    %s2041 = scalar_lea.sflag [#allocation11], 1
    %2042 = vsyncpa %s2041, 1
    %2043 = vsyncpa [#allocation14], 1
    %s2044 = scalar_lea.sflag [#allocation14], 1
    %2045 = vsyncpa %s2044, 1
    %2046 = vsyncpa [#allocation6], 1
    %s2047 = scalar_lea.sflag [#allocation6], 1
    %2048 = vsyncpa %s2047, 1

</llo_original>
